<compile_context>
chip_gen: v7x
topology: tpu7x:2x2x1
jax: 0.10.0
libtpu: 0.0.40
codegen_flags: <defaults>
</compile_context>

<pallas_src>
import math
import functools

import jax
import jax.numpy as jnp
from jax import lax
from jax.experimental import pallas as pl
from jax.experimental.pallas import tpu as pltpu


def _agg_attn_kernel(gains_ref,
                     q_ref, k_ref, v_ref,
                     wq_ref, bq_ref, wk_ref, bk_ref, wv_ref, bv_ref,
                     wo_ref, bo_ref,
                     *out_and_scratch,
                     num_heads, head_dim, q_tile, seq_len, with_attnw):
    if with_attnw:
        out_ref, attnw_ref, kp_scr, vp_scr = out_and_scratch
    else:
        out_ref, kp_scr, vp_scr = out_and_scratch
        attnw_ref = None

    bf16 = jnp.bfloat16
    f32 = jnp.float32

    # ---- K/V projections: only on the first query tile of each batch element. ----------
    @pl.when(pl.program_id(1) == 0)
    def _project_kv():
        kp = jnp.dot(k_ref[0], wk_ref[...], preferred_element_type=f32) + bk_ref[...]
        vp = jnp.dot(v_ref[0], wv_ref[...], preferred_element_type=f32) + bv_ref[...]
        kp_scr[...] = kp.astype(bf16)
        vp_scr[...] = vp.astype(bf16)

    # ---- Q projection for this tile (lambda_cross/sqrt(hd) already folded into Wq/bq). --
    qp = (jnp.dot(q_ref[0], wq_ref[...], preferred_element_type=f32)
          + bq_ref[...]).astype(bf16)                               # (TQ, D) bf16

    kp_bf = kp_scr[...]                                             # (L, D) bf16
    vp_bf = vp_scr[...]                                             # (L, D) bf16

    # Rows of the projected keys aligned with this query tile (self/aggregation term),
    # scaled once by lambda_self/sqrt(hd).
    c_self = gains_ref[0]
    if q_tile == seq_len:
        kp_rows = kp_bf
    else:
        row0 = pl.multiple_of(pl.program_id(1) * q_tile, q_tile)
        kp_rows = kp_scr[pl.ds(row0, q_tile), :]
    ks_bf = (kp_rows.astype(f32) * c_self).astype(bf16)             # (TQ, D) bf16

    dn = (((1,), (1,)), ((), ()))  # contract last axis of both: A @ B^T
    o_parts = []

    for h in range(num_heads):     # static, small, unrolled
        sl = slice(h * head_dim, (h + 1) * head_dim)

        # Fused score matmul: [q_h | lambda_self*k_h] @ [k_h | v_h]^T  (contraction = 2*hd)
        lhs = jnp.concatenate([qp[:, sl], ks_bf[:, sl]], axis=-1)    # (TQ, 2hd) bf16
        rhs = jnp.concatenate([kp_bf[:, sl], vp_bf[:, sl]], axis=-1)  # (L, 2hd) bf16
        scores = lax.dot_general(lhs, rhs, dn, preferred_element_type=f32)  # (TQ, L)

        # Softmax in f32 (max-stabilized); denominator reciprocal on the EUP slot.
        # TODO(synk): on v6e/v7x the exp could run in bf16 for ~2x EUP throughput.
        m = jnp.max(scores, axis=-1, keepdims=True)
        e = jnp.exp(scores - m)
        inv = pl.reciprocal(jnp.sum(e, axis=-1, keepdims=True), approx=True)
        w = e * inv                                                  # (TQ, L) f32
        w_bf = w.astype(bf16)

        if attnw_ref is not None:
            if jnp.dtype(attnw_ref.dtype) == jnp.dtype(bf16):
                attnw_ref[0, h, :, :] = w_bf
            else:
                attnw_ref[0, h, :, :] = w.astype(attnw_ref.dtype)

        # Per-head output; kept in bf16, merged into one K=D output matmul after the loop.
        o_h = jnp.dot(w_bf, vp_bf[:, sl], preferred_element_type=f32)  # (TQ, hd) f32
        o_parts.append(o_h.astype(bf16))

    o_cat = jnp.concatenate(o_parts, axis=-1)                        # (TQ, D) bf16
    out = jnp.dot(o_cat, wo_ref[...], preferred_element_type=f32) + bo_ref[...]
    out_ref[0] = out.astype(out_ref.dtype)


def _physical_vmem_bytes():
    try:
        return int(pltpu.get_tpu_info().vmem_capacity_bytes)
    except Exception:
        return 64 * 1024 * 1024   # conservative (v7x-sized) fallback


def agg_attn_pallas(q, k, v, params, num_heads, *,
                    return_attn_weights=True, attnw_dtype=jnp.bfloat16,
                    vmem_budget_bytes=None):
    B, L, D = q.shape
    head_dim = D // num_heads
    wq, bq, wk, bk, wv, bv, wo, bo, lq, lk, lv = params

    # --- gate precompute (batch/head invariant); fold cross gate into the Q projection. --
    scale = 1.0 / math.sqrt(head_dim)
    lambda_self = jnp.exp(jnp.sum(lq * lk))     # applied to the k @ v^T (self) term
    lambda_cross = jnp.exp(jnp.sum(lk * lv))    # applied to the q @ k^T (cross) term
    c_cross = lambda_cross * scale
    gains = jnp.reshape(lambda_self * scale, (1,)).astype(jnp.float32)

    bf16 = jnp.bfloat16
    q_bf, k_bf, v_bf = q.astype(bf16), k.astype(bf16), v.astype(bf16)
    wq_bf = (wq * c_cross).astype(bf16)
    bq32 = (bq * c_cross).astype(jnp.float32)
    wk_bf, wv_bf, wo_bf = wk.astype(bf16), wv.astype(bf16), wo.astype(bf16)
    bk32, bv32, bo32 = (b_.astype(jnp.float32) for b_ in (bk, bv, bo))

    # --- tile-size / VMEM-limit selection (generation-aware via physical VMEM query). ----
    attnw_isz = jnp.dtype(attnw_dtype).itemsize if return_attn_weights else 0

    def vmem_estimate(tq):
        est = 0
        est += 2 * tq * D * 2                       # q tile (bf16), double-buffered
        est += 2 * 2 * L * D * 2                    # k, v full blocks (bf16), double-buffered
        est += 2 * (4 * D * D * 2 + 4 * D * 4)      # weights bf16 + biases f32, double-buffered
        est += 2 * tq * D * 4                       # out tile f32, double-buffered
        if return_attn_weights:
            est += 2 * num_heads * tq * L * attnw_isz
        est += 2 * L * D * 2                        # kp/vp VMEM scratch caches (bf16)
        est += 4 * tq * L * 4 + 2 * L * D * 4       # in-kernel f32 temporaries (rough)
        return est

    phys = _physical_vmem_bytes()
    budget = vmem_budget_bytes or min(phys - 16 * 1024 * 1024, 100 * 1024 * 1024)
    candidates = [L] + [c for c in (512, 256, 128) if c < L and L % c == 0]
    TQ = candidates[-1]
    for c in candidates:
        if vmem_estimate(c) <= budget:
            TQ = c
            break
    NQ = L // TQ
    vmem_limit = int(min(max(vmem_estimate(TQ) * 1.25, 32 * 1024 * 1024), budget))

    kernel = functools.partial(_agg_attn_kernel, num_heads=num_heads, head_dim=head_dim,
                               q_tile=TQ, seq_len=L, with_attnw=return_attn_weights)

    qtile3 = lambda b, qi: (b, qi, 0)
    full3 = lambda b, qi: (b, 0, 0)
    full2 = lambda b, qi: (0, 0)

    in_specs = [
        pl.BlockSpec(memory_space=pltpu.MemorySpace.SMEM),            # gains (1,) scalar
        pl.BlockSpec((1, TQ, D), qtile3),                             # q
        pl.BlockSpec((1, L, D), full3),                               # k (only read at qi==0)
        pl.BlockSpec((1, L, D), full3),                               # v (only read at qi==0)
        pl.BlockSpec((D, D), full2), pl.BlockSpec((1, D), full2),     # Wq*gate, bq*gate
        pl.BlockSpec((D, D), full2), pl.BlockSpec((1, D), full2),     # Wk, bk
        pl.BlockSpec((D, D), full2), pl.BlockSpec((1, D), full2),     # Wv, bv
        pl.BlockSpec((D, D), full2), pl.BlockSpec((1, D), full2),     # Wo, bo
    ]
    out_specs = [pl.BlockSpec((1, TQ, D), qtile3)]
    out_shape = [jax.ShapeDtypeStruct((B, L, D), jnp.float32)]
    if return_attn_weights:
        out_specs.append(pl.BlockSpec((1, num_heads, TQ, L), lambda b, qi: (b, 0, qi, 0)))
        out_shape.append(jax.ShapeDtypeStruct((B, num_heads, L, L), attnw_dtype))

    scratch_shapes = [
        pltpu.VMEM((L, D), bf16),    # cached projected K (bias-added, bf16)
        pltpu.VMEM((L, D), bf16),    # cached projected V (bias-added, bf16)
    ]

    res = pl.pallas_call(
        kernel,
        grid=(B, NQ),
        in_specs=in_specs,
        out_specs=tuple(out_specs),
        out_shape=tuple(out_shape),
        scratch_shapes=scratch_shapes,
        compiler_params=pltpu.CompilerParams(
            # qi must be sequential so the kp/vp scratch cache is valid; B feeds megacore.
            dimension_semantics=("parallel", "arbitrary"),
            vmem_limit_bytes=vmem_limit,
        ),
    )(gains, q_bf, k_bf, v_bf, wq_bf, bq32, wk_bf, bk32, wv_bf, bv32, wo_bf, bo32)

    if return_attn_weights:
        out, attnw = res
        return out, attnw
    return res[0] if isinstance(res, (tuple, list)) else res


def agg_attn_reference(q, k, v, params, num_heads):
    """Plain-JAX replica of the PyTorch forward (masks=None), mirroring the kernel's
    bf16 MXU operands / f32 accumulation so it can be compared at tight tolerance."""
    B, L, D = q.shape
    hd = D // num_heads
    wq, bq, wk, bk, wv, bv, wo, bo, lq, lk, lv = params
    bf, f32 = jnp.bfloat16, jnp.float32

    scale = 1.0 / math.sqrt(hd)
    lambda_self = jnp.exp(jnp.sum(lq * lk))
    lambda_cross = jnp.exp(jnp.sum(lk * lv))

    def proj(x, w, b):
        return (jnp.einsum('bld,de->ble', x.astype(bf), w.astype(bf),
                           preferred_element_type=f32) + b[0].astype(f32))

    qp = proj(q, wq * (lambda_cross * scale), bq * (lambda_cross * scale)).astype(bf)
    kp = proj(k, wk, bk).astype(bf)
    vp = proj(v, wv, bv).astype(bf)
    ks = (kp.astype(f32) * (lambda_self * scale)).astype(bf)

    def heads(x):
        return x.reshape(B, L, num_heads, hd).transpose(0, 2, 1, 3)

    qh, kh, vh, ksh = heads(qp), heads(kp), heads(vp), heads(ks)

    scores = (jnp.einsum('bhid,bhjd->bhij', qh, kh, preferred_element_type=f32)
              + jnp.einsum('bhid,bhjd->bhij', ksh, vh, preferred_element_type=f32))
    w = jax.nn.softmax(scores, axis=-1)

    o = jnp.einsum('bhij,bhjd->bhid', w.astype(bf), vh, preferred_element_type=f32)
    o = o.transpose(0, 2, 1, 3).reshape(B, L, D).astype(bf)
    out = jnp.einsum('bld,de->ble', o, wo.astype(bf), preferred_element_type=f32) + bo[0]
    return out, w


def init_params(key, d_model, num_heads):
    head_dim = d_model // num_heads
    ks = jax.random.split(key, 11)
    s = 1.0 / math.sqrt(d_model)
    wq = jax.random.uniform(ks[0], (d_model, d_model), jnp.float32, -s, s)
    bq = jax.random.uniform(ks[1], (1, d_model), jnp.float32, -s, s)
    wk = jax.random.uniform(ks[2], (d_model, d_model), jnp.float32, -s, s)
    bk = jax.random.uniform(ks[3], (1, d_model), jnp.float32, -s, s)
    wv = jax.random.uniform(ks[4], (d_model, d_model), jnp.float32, -s, s)
    bv = jax.random.uniform(ks[5], (1, d_model), jnp.float32, -s, s)
    wo = jax.random.uniform(ks[6], (d_model, d_model), jnp.float32, -s, s)
    bo = jax.random.uniform(ks[7], (1, d_model), jnp.float32, -s, s)
    lq = 0.1 * jax.random.normal(ks[8], (1, head_dim), jnp.float32)
    lk = 0.1 * jax.random.normal(ks[9], (1, head_dim), jnp.float32)
    lv = 0.1 * jax.random.normal(ks[10], (1, head_dim), jnp.float32)
    return (wq, bq, wk, bk, wv, bv, wo, bo, lq, lk, lv)


if __name__ == "__main__":
    B, L, d_model, num_heads = 2, 8, 32, 4

    key = jax.random.PRNGKey(0)
    kq, kk, kv, kparam = jax.random.split(key, 4)
    q = jax.random.normal(kq, (B, L, d_model), jnp.float32)
    k = jax.random.normal(kk, (B, L, d_model), jnp.float32)
    v = jax.random.normal(kv, (B, L, d_model), jnp.float32)
    params = init_params(kparam, d_model, num_heads)

    out, attn_w = agg_attn_pallas(q, k, v, params, num_heads)
    out = jax.block_until_ready(out)
    attn_w = jax.block_until_ready(attn_w)

    ref_out, ref_w = agg_attn_reference(q, k, v, params, num_heads)
    err_out = float(jnp.max(jnp.abs(out - ref_out)))
    err_w = float(jnp.max(jnp.abs(attn_w.astype(jnp.float32) - ref_w)))
    assert jnp.allclose(out, ref_out, atol=2e-2, rtol=2e-2), err_out
    assert jnp.allclose(attn_w.astype(jnp.float32), ref_w, atol=1e-2), err_w

    # Also exercise the weights-free fast path (no O(B*H*L^2) writeback).
    out_only = agg_attn_pallas(q, k, v, params, num_heads, return_attn_weights=False)
    out_only = jax.block_until_ready(out_only)
    assert jnp.allclose(out_only, ref_out, atol=2e-2, rtol=2e-2)

    print("KERNEL_OK")
</pallas_src>

<mosaic_0001>
module attributes {stable_mosaic.version = 11 : i64} {
  func.func @_agg_attn_kernel(%arg0: i32, %arg1: i32, %arg2: memref<1xf32, #tpu.memory_space<smem>>, %arg3: memref<1x8x32xbf16, #tpu.memory_space<vmem>>, %arg4: memref<1x8x32xbf16, #tpu.memory_space<vmem>>, %arg5: memref<1x8x32xbf16, #tpu.memory_space<vmem>>, %arg6: memref<32x32xbf16, #tpu.memory_space<vmem>>, %arg7: memref<1x32xf32, #tpu.memory_space<vmem>>, %arg8: memref<32x32xbf16, #tpu.memory_space<vmem>>, %arg9: memref<1x32xf32, #tpu.memory_space<vmem>>, %arg10: memref<32x32xbf16, #tpu.memory_space<vmem>>, %arg11: memref<1x32xf32, #tpu.memory_space<vmem>>, %arg12: memref<32x32xbf16, #tpu.memory_space<vmem>>, %arg13: memref<1x32xf32, #tpu.memory_space<vmem>>, %arg14: memref<1x8x32xf32, #tpu.memory_space<vmem>>, %arg15: memref<1x4x8x8xbf16, #tpu.memory_space<vmem>>, %arg16: memref<8x32xbf16, #tpu.memory_space<vmem>>, %arg17: memref<8x32xbf16, #tpu.memory_space<vmem>>) attributes {dimension_semantics = [#tpu.dimension_semantics<parallel>, #tpu.dimension_semantics<arbitrary>], iteration_bounds = array<i64: 2, 1>, scalar_prefetch = 0 : i64, scratch_operands = 2 : i64, tpu.core_type = #tpu.core_type<tc>, window_params = [{transform_indices = @transform_0, window_bounds = array<i64: 1>}, {transform_indices = @transform_1, window_bounds = array<i64: 1, 8, 32>}, {transform_indices = @transform_2, window_bounds = array<i64: 1, 8, 32>}, {transform_indices = @transform_3, window_bounds = array<i64: 1, 8, 32>}, {pipeline_mode = #tpu.pipeline_mode<synchronous>, transform_indices = @transform_4, window_bounds = array<i64: 32, 32>}, {pipeline_mode = #tpu.pipeline_mode<synchronous>, transform_indices = @transform_5, window_bounds = array<i64: 1, 32>}, {pipeline_mode = #tpu.pipeline_mode<synchronous>, transform_indices = @transform_6, window_bounds = array<i64: 32, 32>}, {pipeline_mode = #tpu.pipeline_mode<synchronous>, transform_indices = @transform_7, window_bounds = array<i64: 1, 32>}, {pipeline_mode = #tpu.pipeline_mode<synchronous>, transform_indices = @transform_8, window_bounds = array<i64: 32, 32>}, {pipeline_mode = #tpu.pipeline_mode<synchronous>, transform_indices = @transform_9, window_bounds = array<i64: 1, 32>}, {pipeline_mode = #tpu.pipeline_mode<synchronous>, transform_indices = @transform_10, window_bounds = array<i64: 32, 32>}, {pipeline_mode = #tpu.pipeline_mode<synchronous>, transform_indices = @transform_11, window_bounds = array<i64: 1, 32>}, {transform_indices = @transform_12, window_bounds = array<i64: 1, 8, 32>}, {transform_indices = @transform_13, window_bounds = array<i64: 1, 4, 8, 8>}]} {
    %c0_i32 = arith.constant 0 : i32
    %0 = arith.cmpi eq, %arg1, %c0_i32 : i32
    %1 = arith.extui %0 : i1 to i32
    %c0_i32_0 = arith.constant 0 : i32
    %2 = arith.cmpi ne, %1, %c0_i32_0 : i32
    scf.if %2 {
      %c0_49 = arith.constant 0 : index
      %c0_50 = arith.constant 0 : index
      %c0_51 = arith.constant 0 : index
      %123 = vector.load %arg4[%c0_49, %c0_50, %c0_51] : memref<1x8x32xbf16, #tpu.memory_space<vmem>>, vector<1x8x32xbf16>
      %124 = vector.shape_cast %123 : vector<1x8x32xbf16> to vector<8x32xbf16>
      %c0_52 = arith.constant 0 : index
      %c0_53 = arith.constant 0 : index
      %125 = vector.load %arg8[%c0_52, %c0_53] : memref<32x32xbf16, #tpu.memory_space<vmem>>, vector<32x32xbf16>
      %cst_54 = arith.constant dense<0.000000e+00> : vector<8x32xf32>
      %126 = tpu.matmul %124, %125, %cst_54 {dimension_numbers = #tpu.dot_dimension_numbers<[1], [0], [0], [1], [0, 0, 1, 1], [], []>} : vector<8x32xbf16>, vector<32x32xbf16>, vector<8x32xf32> -> vector<8x32xf32>
      %c0_55 = arith.constant 0 : index
      %c0_56 = arith.constant 0 : index
      %127 = vector.load %arg9[%c0_55, %c0_56] : memref<1x32xf32, #tpu.memory_space<vmem>>, vector<1x32xf32>
      %128 = vector.broadcast %127 : vector<1x32xf32> to vector<8x32xf32>
      %129 = arith.addf %126, %128 : vector<8x32xf32>
      %c0_57 = arith.constant 0 : index
      %c0_58 = arith.constant 0 : index
      %c0_59 = arith.constant 0 : index
      %130 = vector.load %arg5[%c0_57, %c0_58, %c0_59] : memref<1x8x32xbf16, #tpu.memory_space<vmem>>, vector<1x8x32xbf16>
      %131 = vector.shape_cast %130 : vector<1x8x32xbf16> to vector<8x32xbf16>
      %c0_60 = arith.constant 0 : index
      %c0_61 = arith.constant 0 : index
      %132 = vector.load %arg10[%c0_60, %c0_61] : memref<32x32xbf16, #tpu.memory_space<vmem>>, vector<32x32xbf16>
      %cst_62 = arith.constant dense<0.000000e+00> : vector<8x32xf32>
      %133 = tpu.matmul %131, %132, %cst_62 {dimension_numbers = #tpu.dot_dimension_numbers<[1], [0], [0], [1], [0, 0, 1, 1], [], []>} : vector<8x32xbf16>, vector<32x32xbf16>, vector<8x32xf32> -> vector<8x32xf32>
      %c0_63 = arith.constant 0 : index
      %c0_64 = arith.constant 0 : index
      %134 = vector.load %arg11[%c0_63, %c0_64] : memref<1x32xf32, #tpu.memory_space<vmem>>, vector<1x32xf32>
      %135 = vector.broadcast %134 : vector<1x32xf32> to vector<8x32xf32>
      %136 = arith.addf %133, %135 : vector<8x32xf32>
      %137 = arith.truncf %129 : vector<8x32xf32> to vector<8x32xbf16>
      %c0_65 = arith.constant 0 : index
      %c0_66 = arith.constant 0 : index
      %138 = vector.load %arg16[%c0_65, %c0_66] : memref<8x32xbf16, #tpu.memory_space<vmem>>, vector<8x32xbf16>
      tpu.vector_store %arg16[%c0_65, %c0_66], %137 {strides = array<i32>} : memref<8x32xbf16, #tpu.memory_space<vmem>>, vector<8x32xbf16>,
      %139 = arith.truncf %136 : vector<8x32xf32> to vector<8x32xbf16>
      %c0_67 = arith.constant 0 : index
      %c0_68 = arith.constant 0 : index
      %140 = vector.load %arg17[%c0_67, %c0_68] : memref<8x32xbf16, #tpu.memory_space<vmem>>, vector<8x32xbf16>
      tpu.vector_store %arg17[%c0_67, %c0_68], %139 {strides = array<i32>} : memref<8x32xbf16, #tpu.memory_space<vmem>>, vector<8x32xbf16>,
    } else {
    }
    %c0 = arith.constant 0 : index
    %c0_1 = arith.constant 0 : index
    %c0_2 = arith.constant 0 : index
    %3 = vector.load %arg3[%c0, %c0_1, %c0_2] : memref<1x8x32xbf16, #tpu.memory_space<vmem>>, vector<1x8x32xbf16>
    %4 = vector.shape_cast %3 : vector<1x8x32xbf16> to vector<8x32xbf16>
    %c0_3 = arith.constant 0 : index
    %c0_4 = arith.constant 0 : index
    %5 = vector.load %arg6[%c0_3, %c0_4] : memref<32x32xbf16, #tpu.memory_space<vmem>>, vector<32x32xbf16>
    %cst = arith.constant dense<0.000000e+00> : vector<8x32xf32>
    %6 = tpu.matmul %4, %5, %cst {dimension_numbers = #tpu.dot_dimension_numbers<[1], [0], [0], [1], [0, 0, 1, 1], [], []>} : vector<8x32xbf16>, vector<32x32xbf16>, vector<8x32xf32> -> vector<8x32xf32>
    %c0_5 = arith.constant 0 : index
    %c0_6 = arith.constant 0 : index
    %7 = vector.load %arg7[%c0_5, %c0_6] : memref<1x32xf32, #tpu.memory_space<vmem>>, vector<1x32xf32>
    %8 = vector.broadcast %7 : vector<1x32xf32> to vector<8x32xf32>
    %9 = arith.addf %6, %8 : vector<8x32xf32>
    %10 = arith.truncf %9 : vector<8x32xf32> to vector<8x32xbf16>
    %c0_7 = arith.constant 0 : index
    %c0_8 = arith.constant 0 : index
    %11 = vector.load %arg16[%c0_7, %c0_8] : memref<8x32xbf16, #tpu.memory_space<vmem>>, vector<8x32xbf16>
    %c0_9 = arith.constant 0 : index
    %c0_10 = arith.constant 0 : index
    %12 = vector.load %arg17[%c0_9, %c0_10] : memref<8x32xbf16, #tpu.memory_space<vmem>>, vector<8x32xbf16>
    %c0_11 = arith.constant 0 : index
    %13 = memref.load %arg2[%c0_11] : memref<1xf32, #tpu.memory_space<smem>>
    %14 = arith.extf %11 : vector<8x32xbf16> to vector<8x32xf32>
    %15 = vector.broadcast %13 : f32 to vector<8x32xf32>
    %16 = arith.mulf %14, %15 : vector<8x32xf32>
    %17 = arith.truncf %16 : vector<8x32xf32> to vector<8x32xbf16>
    %18 = vector.extract_strided_slice %10 {offsets = [0, 0], sizes = [8, 8], strides = [1, 1]} : vector<8x32xbf16> to vector<8x8xbf16>
    %19 = vector.extract_strided_slice %17 {offsets = [0, 0], sizes = [8, 8], strides = [1, 1]} : vector<8x32xbf16> to vector<8x8xbf16>
    %20 = tpu.concatenate %18, %19 in 1 : vector<8x8xbf16>, vector<8x8xbf16> -> vector<8x16xbf16>
    %21 = vector.extract_strided_slice %11 {offsets = [0, 0], sizes = [8, 8], strides = [1, 1]} : vector<8x32xbf16> to vector<8x8xbf16>
    %22 = vector.extract_strided_slice %12 {offsets = [0, 0], sizes = [8, 8], strides = [1, 1]} : vector<8x32xbf16> to vector<8x8xbf16>
    %23 = tpu.concatenate %21, %22 in 1 : vector<8x8xbf16>, vector<8x8xbf16> -> vector<8x16xbf16>
    %cst_12 = arith.constant dense<0.000000e+00> : vector<8x8xf32>
    %24 = tpu.matmul %20, %23, %cst_12 {dimension_numbers = #tpu.dot_dimension_numbers<[1], [1], [0], [0], [0, 0, 1, 0], [], []>} : vector<8x16xbf16>, vector<8x16xbf16>, vector<8x8xf32> -> vector<8x8xf32>
    %cst_13 = arith.constant dense<0xFF800000> : vector<8xf32>
    %25 = vector.multi_reduction <maximumf>, %24, %cst_13 [1] : vector<8x8xf32> to vector<8xf32>
    %26 = vector.shape_cast %25 : vector<8xf32> to vector<8x1xf32>
    %27 = vector.broadcast %26 : vector<8x1xf32> to vector<8x8xf32>
    %28 = arith.subf %24, %27 : vector<8x8xf32>
    %29 = math.exp %28 : vector<8x8xf32>
    %cst_14 = arith.constant dense<0.000000e+00> : vector<8xf32>
    %30 = vector.multi_reduction <add>, %29, %cst_14 [1] : vector<8x8xf32> to vector<8xf32>
    %31 = vector.shape_cast %30 : vector<8xf32> to vector<8x1xf32>
    %32 = tpu.reciprocal %31 {approx = true} : vector<8x1xf32> -> vector<8x1xf32>
    %33 = vector.broadcast %32 : vector<8x1xf32> to vector<8x8xf32>
    %34 = arith.mulf %29, %33 : vector<8x8xf32>
    %35 = arith.truncf %34 : vector<8x8xf32> to vector<8x8xbf16>
    %c0_15 = arith.constant 0 : index
    %c0_16 = arith.constant 0 : index
    %c0_17 = arith.constant 0 : index
    %c0_18 = arith.constant 0 : index
    %36 = vector.load %arg15[%c0_15, %c0_16, %c0_17, %c0_18] : memref<1x4x8x8xbf16, #tpu.memory_space<vmem>>, vector<1x1x8x8xbf16>
    %37 = vector.shape_cast %36 : vector<1x1x8x8xbf16> to vector<8x8xbf16>
    %38 = vector.shape_cast %35 : vector<8x8xbf16> to vector<1x1x8x8xbf16>
    tpu.vector_store %arg15[%c0_15, %c0_16, %c0_17, %c0_18], %38 {strides = array<i32>} : memref<1x4x8x8xbf16, #tpu.memory_space<vmem>>, vector<1x1x8x8xbf16>,
    %39 = vector.extract_strided_slice %12 {offsets = [0, 0], sizes = [8, 8], strides = [1, 1]} : vector<8x32xbf16> to vector<8x8xbf16>
    %cst_19 = arith.constant dense<0.000000e+00> : vector<8x8xf32>
    %40 = tpu.matmul %35, %39, %cst_19 {dimension_numbers = #tpu.dot_dimension_numbers<[1], [0], [0], [1], [0, 0, 1, 1], [], []>} : vector<8x8xbf16>, vector<8x8xbf16>, vector<8x8xf32> -> vector<8x8xf32>
    %41 = arith.truncf %40 : vector<8x8xf32> to vector<8x8xbf16>
    %42 = vector.extract_strided_slice %10 {offsets = [0, 8], sizes = [8, 8], strides = [1, 1]} : vector<8x32xbf16> to vector<8x8xbf16>
    %43 = vector.extract_strided_slice %17 {offsets = [0, 8], sizes = [8, 8], strides = [1, 1]} : vector<8x32xbf16> to vector<8x8xbf16>
    %44 = tpu.concatenate %42, %43 in 1 : vector<8x8xbf16>, vector<8x8xbf16> -> vector<8x16xbf16>
    %45 = vector.extract_strided_slice %11 {offsets = [0, 8], sizes = [8, 8], strides = [1, 1]} : vector<8x32xbf16> to vector<8x8xbf16>
    %46 = vector.extract_strided_slice %12 {offsets = [0, 8], sizes = [8, 8], strides = [1, 1]} : vector<8x32xbf16> to vector<8x8xbf16>
    %47 = tpu.concatenate %45, %46 in 1 : vector<8x8xbf16>, vector<8x8xbf16> -> vector<8x16xbf16>
    %cst_20 = arith.constant dense<0.000000e+00> : vector<8x8xf32>
    %48 = tpu.matmul %44, %47, %cst_20 {dimension_numbers = #tpu.dot_dimension_numbers<[1], [1], [0], [0], [0, 0, 1, 0], [], []>} : vector<8x16xbf16>, vector<8x16xbf16>, vector<8x8xf32> -> vector<8x8xf32>
    %cst_21 = arith.constant dense<0xFF800000> : vector<8xf32>
    %49 = vector.multi_reduction <maximumf>, %48, %cst_21 [1] : vector<8x8xf32> to vector<8xf32>
    %50 = vector.shape_cast %49 : vector<8xf32> to vector<8x1xf32>
    %51 = vector.broadcast %50 : vector<8x1xf32> to vector<8x8xf32>
    %52 = arith.subf %48, %51 : vector<8x8xf32>
    %53 = math.exp %52 : vector<8x8xf32>
    %cst_22 = arith.constant dense<0.000000e+00> : vector<8xf32>
    %54 = vector.multi_reduction <add>, %53, %cst_22 [1] : vector<8x8xf32> to vector<8xf32>
    %55 = vector.shape_cast %54 : vector<8xf32> to vector<8x1xf32>
    %56 = tpu.reciprocal %55 {approx = true} : vector<8x1xf32> -> vector<8x1xf32>
    %57 = vector.broadcast %56 : vector<8x1xf32> to vector<8x8xf32>
    %58 = arith.mulf %53, %57 : vector<8x8xf32>
    %59 = arith.truncf %58 : vector<8x8xf32> to vector<8x8xbf16>
    %c0_23 = arith.constant 0 : index
    %c1 = arith.constant 1 : index
    %c0_24 = arith.constant 0 : index
    %c0_25 = arith.constant 0 : index
    %60 = vector.load %arg15[%c0_23, %c1, %c0_24, %c0_25] : memref<1x4x8x8xbf16, #tpu.memory_space<vmem>>, vector<1x1x8x8xbf16>
    %61 = vector.shape_cast %60 : vector<1x1x8x8xbf16> to vector<8x8xbf16>
    %62 = vector.shape_cast %59 : vector<8x8xbf16> to vector<1x1x8x8xbf16>
    tpu.vector_store %arg15[%c0_23, %c1, %c0_24, %c0_25], %62 {strides = array<i32>} : memref<1x4x8x8xbf16, #tpu.memory_space<vmem>>, vector<1x1x8x8xbf16>,
    %63 = vector.extract_strided_slice %12 {offsets = [0, 8], sizes = [8, 8], strides = [1, 1]} : vector<8x32xbf16> to vector<8x8xbf16>
    %cst_26 = arith.constant dense<0.000000e+00> : vector<8x8xf32>
    %64 = tpu.matmul %59, %63, %cst_26 {dimension_numbers = #tpu.dot_dimension_numbers<[1], [0], [0], [1], [0, 0, 1, 1], [], []>} : vector<8x8xbf16>, vector<8x8xbf16>, vector<8x8xf32> -> vector<8x8xf32>
    %65 = arith.truncf %64 : vector<8x8xf32> to vector<8x8xbf16>
    %66 = vector.extract_strided_slice %10 {offsets = [0, 16], sizes = [8, 8], strides = [1, 1]} : vector<8x32xbf16> to vector<8x8xbf16>
    %67 = vector.extract_strided_slice %17 {offsets = [0, 16], sizes = [8, 8], strides = [1, 1]} : vector<8x32xbf16> to vector<8x8xbf16>
    %68 = tpu.concatenate %66, %67 in 1 : vector<8x8xbf16>, vector<8x8xbf16> -> vector<8x16xbf16>
    %69 = vector.extract_strided_slice %11 {offsets = [0, 16], sizes = [8, 8], strides = [1, 1]} : vector<8x32xbf16> to vector<8x8xbf16>
    %70 = vector.extract_strided_slice %12 {offsets = [0, 16], sizes = [8, 8], strides = [1, 1]} : vector<8x32xbf16> to vector<8x8xbf16>
    %71 = tpu.concatenate %69, %70 in 1 : vector<8x8xbf16>, vector<8x8xbf16> -> vector<8x16xbf16>
    %cst_27 = arith.constant dense<0.000000e+00> : vector<8x8xf32>
    %72 = tpu.matmul %68, %71, %cst_27 {dimension_numbers = #tpu.dot_dimension_numbers<[1], [1], [0], [0], [0, 0, 1, 0], [], []>} : vector<8x16xbf16>, vector<8x16xbf16>, vector<8x8xf32> -> vector<8x8xf32>
    %cst_28 = arith.constant dense<0xFF800000> : vector<8xf32>
    %73 = vector.multi_reduction <maximumf>, %72, %cst_28 [1] : vector<8x8xf32> to vector<8xf32>
    %74 = vector.shape_cast %73 : vector<8xf32> to vector<8x1xf32>
    %75 = vector.broadcast %74 : vector<8x1xf32> to vector<8x8xf32>
    %76 = arith.subf %72, %75 : vector<8x8xf32>
    %77 = math.exp %76 : vector<8x8xf32>
    %cst_29 = arith.constant dense<0.000000e+00> : vector<8xf32>
    %78 = vector.multi_reduction <add>, %77, %cst_29 [1] : vector<8x8xf32> to vector<8xf32>
    %79 = vector.shape_cast %78 : vector<8xf32> to vector<8x1xf32>
    %80 = tpu.reciprocal %79 {approx = true} : vector<8x1xf32> -> vector<8x1xf32>
    %81 = vector.broadcast %80 : vector<8x1xf32> to vector<8x8xf32>
    %82 = arith.mulf %77, %81 : vector<8x8xf32>
    %83 = arith.truncf %82 : vector<8x8xf32> to vector<8x8xbf16>
    %c0_30 = arith.constant 0 : index
    %c2 = arith.constant 2 : index
    %c0_31 = arith.constant 0 : index
    %c0_32 = arith.constant 0 : index
    %84 = vector.load %arg15[%c0_30, %c2, %c0_31, %c0_32] : memref<1x4x8x8xbf16, #tpu.memory_space<vmem>>, vector<1x1x8x8xbf16>
    %85 = vector.shape_cast %84 : vector<1x1x8x8xbf16> to vector<8x8xbf16>
    %86 = vector.shape_cast %83 : vector<8x8xbf16> to vector<1x1x8x8xbf16>
    tpu.vector_store %arg15[%c0_30, %c2, %c0_31, %c0_32], %86 {strides = array<i32>} : memref<1x4x8x8xbf16, #tpu.memory_space<vmem>>, vector<1x1x8x8xbf16>,
    %87 = vector.extract_strided_slice %12 {offsets = [0, 16], sizes = [8, 8], strides = [1, 1]} : vector<8x32xbf16> to vector<8x8xbf16>
    %cst_33 = arith.constant dense<0.000000e+00> : vector<8x8xf32>
    %88 = tpu.matmul %83, %87, %cst_33 {dimension_numbers = #tpu.dot_dimension_numbers<[1], [0], [0], [1], [0, 0, 1, 1], [], []>} : vector<8x8xbf16>, vector<8x8xbf16>, vector<8x8xf32> -> vector<8x8xf32>
    %89 = arith.truncf %88 : vector<8x8xf32> to vector<8x8xbf16>
    %90 = vector.extract_strided_slice %10 {offsets = [0, 24], sizes = [8, 8], strides = [1, 1]} : vector<8x32xbf16> to vector<8x8xbf16>
    %91 = vector.extract_strided_slice %17 {offsets = [0, 24], sizes = [8, 8], strides = [1, 1]} : vector<8x32xbf16> to vector<8x8xbf16>
    %92 = tpu.concatenate %90, %91 in 1 : vector<8x8xbf16>, vector<8x8xbf16> -> vector<8x16xbf16>
    %93 = vector.extract_strided_slice %11 {offsets = [0, 24], sizes = [8, 8], strides = [1, 1]} : vector<8x32xbf16> to vector<8x8xbf16>
    %94 = vector.extract_strided_slice %12 {offsets = [0, 24], sizes = [8, 8], strides = [1, 1]} : vector<8x32xbf16> to vector<8x8xbf16>
    %95 = tpu.concatenate %93, %94 in 1 : vector<8x8xbf16>, vector<8x8xbf16> -> vector<8x16xbf16>
    %cst_34 = arith.constant dense<0.000000e+00> : vector<8x8xf32>
    %96 = tpu.matmul %92, %95, %cst_34 {dimension_numbers = #tpu.dot_dimension_numbers<[1], [1], [0], [0], [0, 0, 1, 0], [], []>} : vector<8x16xbf16>, vector<8x16xbf16>, vector<8x8xf32> -> vector<8x8xf32>
    %cst_35 = arith.constant dense<0xFF800000> : vector<8xf32>
    %97 = vector.multi_reduction <maximumf>, %96, %cst_35 [1] : vector<8x8xf32> to vector<8xf32>
    %98 = vector.shape_cast %97 : vector<8xf32> to vector<8x1xf32>
    %99 = vector.broadcast %98 : vector<8x1xf32> to vector<8x8xf32>
    %100 = arith.subf %96, %99 : vector<8x8xf32>
    %101 = math.exp %100 : vector<8x8xf32>
    %cst_36 = arith.constant dense<0.000000e+00> : vector<8xf32>
    %102 = vector.multi_reduction <add>, %101, %cst_36 [1] : vector<8x8xf32> to vector<8xf32>
    %103 = vector.shape_cast %102 : vector<8xf32> to vector<8x1xf32>
    %104 = tpu.reciprocal %103 {approx = true} : vector<8x1xf32> -> vector<8x1xf32>
    %105 = vector.broadcast %104 : vector<8x1xf32> to vector<8x8xf32>
    %106 = arith.mulf %101, %105 : vector<8x8xf32>
    %107 = arith.truncf %106 : vector<8x8xf32> to vector<8x8xbf16>
    %c0_37 = arith.constant 0 : index
    %c3 = arith.constant 3 : index
    %c0_38 = arith.constant 0 : index
    %c0_39 = arith.constant 0 : index
    %108 = vector.load %arg15[%c0_37, %c3, %c0_38, %c0_39] : memref<1x4x8x8xbf16, #tpu.memory_space<vmem>>, vector<1x1x8x8xbf16>
    %109 = vector.shape_cast %108 : vector<1x1x8x8xbf16> to vector<8x8xbf16>
    %110 = vector.shape_cast %107 : vector<8x8xbf16> to vector<1x1x8x8xbf16>
    tpu.vector_store %arg15[%c0_37, %c3, %c0_38, %c0_39], %110 {strides = array<i32>} : memref<1x4x8x8xbf16, #tpu.memory_space<vmem>>, vector<1x1x8x8xbf16>,
    %111 = vector.extract_strided_slice %12 {offsets = [0, 24], sizes = [8, 8], strides = [1, 1]} : vector<8x32xbf16> to vector<8x8xbf16>
    %cst_40 = arith.constant dense<0.000000e+00> : vector<8x8xf32>
    %112 = tpu.matmul %107, %111, %cst_40 {dimension_numbers = #tpu.dot_dimension_numbers<[1], [0], [0], [1], [0, 0, 1, 1], [], []>} : vector<8x8xbf16>, vector<8x8xbf16>, vector<8x8xf32> -> vector<8x8xf32>
    %113 = arith.truncf %112 : vector<8x8xf32> to vector<8x8xbf16>
    %114 = tpu.concatenate %41, %65, %89, %113 in 1 : vector<8x8xbf16>, vector<8x8xbf16>, vector<8x8xbf16>, vector<8x8xbf16> -> vector<8x32xbf16>
    %c0_41 = arith.constant 0 : index
    %c0_42 = arith.constant 0 : index
    %115 = vector.load %arg12[%c0_41, %c0_42] : memref<32x32xbf16, #tpu.memory_space<vmem>>, vector<32x32xbf16>
    %cst_43 = arith.constant dense<0.000000e+00> : vector<8x32xf32>
    %116 = tpu.matmul %114, %115, %cst_43 {dimension_numbers = #tpu.dot_dimension_numbers<[1], [0], [0], [1], [0, 0, 1, 1], [], []>} : vector<8x32xbf16>, vector<32x32xbf16>, vector<8x32xf32> -> vector<8x32xf32>
    %c0_44 = arith.constant 0 : index
    %c0_45 = arith.constant 0 : index
    %117 = vector.load %arg13[%c0_44, %c0_45] : memref<1x32xf32, #tpu.memory_space<vmem>>, vector<1x32xf32>
    %118 = vector.broadcast %117 : vector<1x32xf32> to vector<8x32xf32>
    %119 = arith.addf %116, %118 : vector<8x32xf32>
    %c0_46 = arith.constant 0 : index
    %c0_47 = arith.constant 0 : index
    %c0_48 = arith.constant 0 : index
    %120 = vector.load %arg14[%c0_46, %c0_47, %c0_48] : memref<1x8x32xf32, #tpu.memory_space<vmem>>, vector<1x8x32xf32>
    %121 = vector.shape_cast %120 : vector<1x8x32xf32> to vector<8x32xf32>
    %122 = vector.shape_cast %119 : vector<8x32xf32> to vector<1x8x32xf32>
    tpu.vector_store %arg14[%c0_46, %c0_47, %c0_48], %122 {strides = array<i32>} : memref<1x8x32xf32, #tpu.memory_space<vmem>>, vector<1x8x32xf32>,
    return
  }
  func.func @transform_0(%arg0: i32, %arg1: i32) -> i32 {
    %c0_i32 = arith.constant 0 : i32
    %c0_i32_0 = arith.constant 0 : i32
    return %c0_i32 : i32
  }
  func.func @transform_1(%arg0: i32, %arg1: i32) -> (i32, i32, i32) {
    %c0_i32 = arith.constant 0 : i32
    %c0_i32_0 = arith.constant 0 : i32
    return %arg0, %arg1, %c0_i32 : i32, i32, i32
  }
  func.func @transform_2(%arg0: i32, %arg1: i32) -> (i32, i32, i32) {
    %c0_i32 = arith.constant 0 : i32
    %c0_i32_0 = arith.constant 0 : i32
    %c0_i32_1 = arith.constant 0 : i32
    return %arg0, %c0_i32, %c0_i32_0 : i32, i32, i32
  }
  func.func @transform_3(%arg0: i32, %arg1: i32) -> (i32, i32, i32) {
    %c0_i32 = arith.constant 0 : i32
    %c0_i32_0 = arith.constant 0 : i32
    %c0_i32_1 = arith.constant 0 : i32
    return %arg0, %c0_i32, %c0_i32_0 : i32, i32, i32
  }
  func.func @transform_4(%arg0: i32, %arg1: i32) -> (i32, i32) {
    %c0_i32 = arith.constant 0 : i32
    %c0_i32_0 = arith.constant 0 : i32
    %c0_i32_1 = arith.constant 0 : i32
    return %c0_i32, %c0_i32_0 : i32, i32
  }
  func.func @transform_5(%arg0: i32, %arg1: i32) -> (i32, i32) {
    %c0_i32 = arith.constant 0 : i32
    %c0_i32_0 = arith.constant 0 : i32
    %c0_i32_1 = arith.constant 0 : i32
    return %c0_i32, %c0_i32_0 : i32, i32
  }
  func.func @transform_6(%arg0: i32, %arg1: i32) -> (i32, i32) {
    %c0_i32 = arith.constant 0 : i32
    %c0_i32_0 = arith.constant 0 : i32
    %c0_i32_1 = arith.constant 0 : i32
    return %c0_i32, %c0_i32_0 : i32, i32
  }
  func.func @transform_7(%arg0: i32, %arg1: i32) -> (i32, i32) {
    %c0_i32 = arith.constant 0 : i32
    %c0_i32_0 = arith.constant 0 : i32
    %c0_i32_1 = arith.constant 0 : i32
    return %c0_i32, %c0_i32_0 : i32, i32
  }
  func.func @transform_8(%arg0: i32, %arg1: i32) -> (i32, i32) {
    %c0_i32 = arith.constant 0 : i32
    %c0_i32_0 = arith.constant 0 : i32
    %c0_i32_1 = arith.constant 0 : i32
    return %c0_i32, %c0_i32_0 : i32, i32
  }
  func.func @transform_9(%arg0: i32, %arg1: i32) -> (i32, i32) {
    %c0_i32 = arith.constant 0 : i32
    %c0_i32_0 = arith.constant 0 : i32
    %c0_i32_1 = arith.constant 0 : i32
    return %c0_i32, %c0_i32_0 : i32, i32
  }
  func.func @transform_10(%arg0: i32, %arg1: i32) -> (i32, i32) {
    %c0_i32 = arith.constant 0 : i32
    %c0_i32_0 = arith.constant 0 : i32
    %c0_i32_1 = arith.constant 0 : i32
    return %c0_i32, %c0_i32_0 : i32, i32
  }
  func.func @transform_11(%arg0: i32, %arg1: i32) -> (i32, i32) {
    %c0_i32 = arith.constant 0 : i32
    %c0_i32_0 = arith.constant 0 : i32
    %c0_i32_1 = arith.constant 0 : i32
    return %c0_i32, %c0_i32_0 : i32, i32
  }
  func.func @transform_12(%arg0: i32, %arg1: i32) -> (i32, i32, i32) {
    %c0_i32 = arith.constant 0 : i32
    %c0_i32_0 = arith.constant 0 : i32
    return %arg0, %arg1, %c0_i32 : i32, i32, i32
  }
  func.func @transform_13(%arg0: i32, %arg1: i32) -> (i32, i32, i32, i32) {
    %c0_i32 = arith.constant 0 : i32
    %c0_i32_0 = arith.constant 0 : i32
    %c0_i32_1 = arith.constant 0 : i32
    return %arg0, %c0_i32, %arg1, %c0_i32_0 : i32, i32, i32, i32
  }
}

</mosaic_0001>

<llo_original>
// kernel: tpu_custom_call.1
$region0: #{tpu_custom_call.1}
  #allocation0 [shape = 'u32[]', space=smem, size = 0x4, offset = 0x4, fixed_abs, tag = 'smem constant byte address 0x4 - core index']
  #allocation1 [shape = 'u32[144,128]{1,0:T(1,128)}', space=vmem, size = 0x12000, scoped, tag = 'internal scratch']
  #allocation2 [shape = 'bf16[8,32]{1,0:T(8,128)(2,1)}', space=vmem, size = 0x800, scoped, tag = 'scratch operand']
  #allocation3 [shape = 'bf16[8,32]{1,0:T(8,128)(2,1)}', space=vmem, size = 0x800, scoped, tag = 'scratch operand']
  #allocation4 [shape = 'f32[1]{0:T(128)S(6)}', space=smem, size = 0x200, scoped, tag = 'scoped memory for tpu_custom_call.1']
  %s0 = inlined_call_operand.<no memory space> [shape: f32[1], index: 0, kind: input, shape index: {}]
  %s1 = inlined_call_operand.hbm [shape: bf16[2,8,32], index: 1, kind: input, shape index: {}]
  %s2 = inlined_call_operand.hbm [shape: bf16[2,8,32], index: 2, kind: input, shape index: {}]
  %s3 = inlined_call_operand.hbm [shape: bf16[2,8,32], index: 3, kind: input, shape index: {}]
  %s4 = inlined_call_operand.hbm [shape: bf16[32,32], index: 4, kind: input, shape index: {}]
  %s5 = inlined_call_operand.vmem [shape: f32[1,32], index: 5, kind: input, shape index: {}]
  %s6 = inlined_call_operand.vmem [shape: bf16[32,32], index: 6, kind: input, shape index: {}]
  %s7 = inlined_call_operand.vmem [shape: f32[1,32], index: 7, kind: input, shape index: {}]
  %s8 = inlined_call_operand.hbm [shape: bf16[32,32], index: 8, kind: input, shape index: {}]
  %s9 = inlined_call_operand.hbm [shape: f32[1,32], index: 9, kind: input, shape index: {}]
  %s10 = inlined_call_operand.vmem [shape: bf16[32,32], index: 10, kind: input, shape index: {}]
  %s11 = inlined_call_operand.vmem [shape: f32[1,32], index: 11, kind: input, shape index: {}]
  %s12 = inlined_call_operand.hbm [shape: f32[2,8,32], index: 12, kind: output, shape index: {0}]
  %s13 = inlined_call_operand.hbm [shape: bf16[2,4,8,8], index: 13, kind: output, shape index: {1}]
  %14 = xla_tuple %s12, %s13
  %s15 = sld [smem:[#allocation0]]
  $region117: #{tpu_custom_call.1} parent=0
    _
  %s17 = ssub.s32 1, %s15
  %s18 = scalar_select 0, %s17, %s15
  %19 = sst [smem:[#allocation4]] %s0
  $region1: #{tpu_custom_call.1} parent=0
    #allocation5 [shape = 'u8[4096]{0}', space=vmem, size = 0x1000, scoped, tag = 'input window, operand 1']
    #allocation6 [shape = 's32[2]{0}', space=sflag, size = 0x8, scoped, tag = 'scoped memory for tpu_custom_call.1']
    #allocation7 [shape = 's32[2]{0}', space=sflag, size = 0x8, scoped, tag = 'scoped memory for tpu_custom_call.1']
    #allocation8 [shape = 'u8[4096]{0}', space=vmem, size = 0x1000, scoped, tag = 'input window, operand 2']
    #allocation9 [shape = 's32[2]{0}', space=sflag, size = 0x8, scoped, tag = 'scoped memory for tpu_custom_call.1']
    #allocation10 [shape = 'u8[4096]{0}', space=vmem, size = 0x1000, scoped, tag = 'input window, operand 3']
    #allocation11 [shape = 'u8[8192]{0}', space=vmem, size = 0x2000, scoped, tag = 'input window, operand 4, single buffered']
    #allocation12 [shape = 's32[1]{0}', space=sflag, size = 0x4, scoped, tag = 'scoped memory for tpu_custom_call.1']
    #allocation13 [shape = 'u8[8192]{0}', space=vmem, size = 0x2000, scoped, tag = 'input window, operand 8, single buffered']
    #allocation14 [shape = 'u8[512]{0}', space=vmem, size = 0x400, scoped, tag = 'input window, operand 9, single buffered']
    #allocation15 [shape = 's32[1]{0}', space=sflag, size = 0x4, scoped, tag = 'scoped memory for tpu_custom_call.1']
    #allocation16 [shape = 'u8[8192]{0}', space=vmem, size = 0x2000, scoped, tag = 'output window, operand 0']
    #allocation17 [shape = 'u8[16384]{0}', space=vmem, size = 0x4000, scoped, tag = 'output window, operand 1']
    #allocation18 [shape = 's32[2]{0}', space=sflag, size = 0x8, scoped, tag = 'scoped memory for tpu_custom_call.1']
    %20 = vsyncpa [#allocation6], 0
    %s21 = scalar_lea.sflag [#allocation6], 1
    %22 = vsyncpa %s21, 0
    %23 = vsyncpa [#allocation9], 0
    %s24 = scalar_lea.sflag [#allocation9], 1
    %25 = vsyncpa %s24, 0
    %26 = vsyncpa [#allocation12], 0
    %27 = vsyncpa [#allocation15], 0
    %28 = vsyncpa [#allocation7], 0
    %s29 = scalar_lea.sflag [#allocation7], 1
    %30 = vsyncpa %s29, 0
    %31 = vsyncpa [#allocation18], 0
    %s32 = scalar_lea.sflag [#allocation18], 1
    %33 = vsyncpa %s32, 0
    loop: start=0, step=1, limit=4
    $region2: #{tpu_custom_call.1} parent=1 // loop_pre_header
      _
    $region3: #{tpu_custom_call.1} parent=1 // loop_header
      %s35 = sphi 0, %s39
      %p36 = scmp.ge.s32.totalorder %s35, 4
      %s42 = sphi 0, %s54
      %s43 = sphi 0, %s50
      %s44 = sphi 0, %s42
      %s45 = sphi 0, %s43
      %s46 = sphi 0, %s44
      %s47 = sphi 0, %s45
      %s55 = sphi 0, %s55
      %s57 = sphi 0, %s55
      %s58 = sphi 0, %s57
      %s72 = sphi 0, %s58
      %s80 = sphi 0, %s82
      %s83 = sphi 0, %s80
      %s84 = sphi 0, %s83
      %s100 = sphi 0, %s84
      %s106 = sphi 0, %s108
      %s109 = sphi 0, %s106
      %s110 = sphi 0, %s109
      %s126 = sphi 0, %s110
      %s132 = sphi 0, %s134
      %s135 = sphi 0, %s132
      %s136 = sphi 0, %s135
      %s152 = sphi 0, %s136
      %s156 = sphi 0, %s156
      %s158 = sphi 0, %s156
      %s159 = sphi 0, %s158
      %s173 = sphi 0, %s159
      %s177 = sphi 0, %s177
      %s179 = sphi 0, %s177
      %s180 = sphi 0, %s179
      %s194 = sphi 0, %s180
      %s198 = sphi 0, %s198
      %s200 = sphi 0, %s198
      %s201 = sphi 0, %s200
      %s215 = sphi 0, %s201
      %s219 = sphi 0, %s219
      %s221 = sphi 0, %s219
      %s222 = sphi 0, %s221
      %s236 = sphi 0, %s222
      %s240 = sphi 0, %s240
      %s242 = sphi 0, %s240
      %s243 = sphi 0, %s242
      %s257 = sphi 0, %s243
      %s261 = sphi 0, %s261
      %s263 = sphi 0, %s261
      %s264 = sphi 0, %s263
      %s278 = sphi 0, %s264
      %s282 = sphi 0, %s282
      %s284 = sphi 0, %s282
      %s285 = sphi 0, %s284
      %s299 = sphi 0, %s285
      %s303 = sphi 0, %s303
      %s305 = sphi 0, %s303
      %s306 = sphi 0, %s305
      %s320 = sphi 0, %s306
      %s328 = sphi 0, %s330
      %s331 = sphi 0, %s328
      %s332 = sphi 0, %s331
      %s348 = sphi 0, %s332
      %s356 = sphi 0, %s358
      %s359 = sphi 0, %s356
      %s360 = sphi 0, %s359
      %s376 = sphi 0, %s360
    $region4: #{tpu_custom_call.1} parent=1 // loop_header_branch
      %38 = sbr.rel (%p36) target = $region8
    $region5: #{tpu_custom_call.1} parent=1 // loop_body
      %s40 = ssub.s32 %s35, 1
      %s41 = ssub.s32 %s35, 2
      %s48 = sadd.s32 1, %s43
      %p49 = scmp.ge.s32.totalorder %s48, 1
      %s50 = scalar_select %p49, 0, %s48
      %s51 = sadd.s32 1, %s42
      %s52 = scalar_select %p49, %s51, %s42
      %p53 = scmp.ge.s32.totalorder %s52, 2
      %s54 = scalar_select %p53, 0, %s52
      %s56 = sadd.s32 %s55, 1
      %p59 = scmp.eq.s32.totalorder %s35, 1
      %p60 = scmp.ne.s32.totalorder %s55, %s57
      %p61 = scmp.eq.s32.totalorder %s35, 0
      %p62 = por %p60, %p61
      %p63 = scmp.ne.s32.totalorder %s55, %s57
      %p64 = scmp.eq.s32.totalorder %s40, 1
      %p65 = por %p63, %p64
      %p66 = scmp.ne.s32.totalorder %s57, %s58
      %p67 = scmp.eq.s32.totalorder %s40, 0
      %p68 = por %p66, %p67
      %p69 = scmp.ne.s32.totalorder %s57, %s58
      %p70 = scmp.eq.s32.totalorder %s41, 1
      %p71 = por %p69, %p70
      %p73 = scmp.ne.s32.totalorder %s58, %s72
      %p74 = scmp.eq.s32.totalorder %s41, 0
      %p75 = por %p73, %p74
      %s76 = ssub.s32 %s42, %s54
      %s77 = ssub.s32 %s43, %s50
      %s78 = sor.u32 %s76, %s77
      %p79 = scmp.eq.s32.totalorder %s78, 0
      %s81 = sadd.s32 %s80, 1
      %s82 = scalar_select %p79, %s80, %s81
      %p85 = pneg %p79
      %p86 = scmp.eq.s32.totalorder %s35, 1
      %p87 = por %p85, %p86
      %p88 = scmp.ne.s32.totalorder %s80, %s83
      %p89 = scmp.eq.s32.totalorder %s35, 0
      %p90 = por %p88, %p89
      %p91 = scmp.ne.s32.totalorder %s80, %s83
      %p92 = scmp.eq.s32.totalorder %s40, 1
      %p93 = por %p91, %p92
      %p94 = scmp.ne.s32.totalorder %s83, %s84
      %p95 = scmp.eq.s32.totalorder %s40, 0
      %p96 = por %p94, %p95
      %p97 = scmp.ne.s32.totalorder %s83, %s84
      %p98 = scmp.eq.s32.totalorder %s41, 1
      %p99 = por %p97, %p98
      %p101 = scmp.ne.s32.totalorder %s84, %s100
      %p102 = scmp.eq.s32.totalorder %s41, 0
      %p103 = por %p101, %p102
      %s104 = ssub.s32 %s42, %s54
      %p105 = scmp.eq.s32.totalorder %s104, 0
      %s107 = sadd.s32 %s106, 1
      %s108 = scalar_select %p105, %s106, %s107
      %p111 = pneg %p105
      %p112 = scmp.eq.s32.totalorder %s35, 1
      %p113 = por %p111, %p112
      %p114 = scmp.ne.s32.totalorder %s106, %s109
      %p115 = scmp.eq.s32.totalorder %s35, 0
      %p116 = por %p114, %p115
      %p117 = scmp.ne.s32.totalorder %s106, %s109
      %p118 = scmp.eq.s32.totalorder %s40, 1
      %p119 = por %p117, %p118
      %p120 = scmp.ne.s32.totalorder %s109, %s110
      %p121 = scmp.eq.s32.totalorder %s40, 0
      %p122 = por %p120, %p121
      %p123 = scmp.ne.s32.totalorder %s109, %s110
      %p124 = scmp.eq.s32.totalorder %s41, 1
      %p125 = por %p123, %p124
      %p127 = scmp.ne.s32.totalorder %s110, %s126
      %p128 = scmp.eq.s32.totalorder %s41, 0
      %p129 = por %p127, %p128
      %s130 = ssub.s32 %s42, %s54
      %p131 = scmp.eq.s32.totalorder %s130, 0
      %s133 = sadd.s32 %s132, 1
      %s134 = scalar_select %p131, %s132, %s133
      %p137 = pneg %p131
      %p138 = scmp.eq.s32.totalorder %s35, 1
      %p139 = por %p137, %p138
      %p140 = scmp.ne.s32.totalorder %s132, %s135
      %p141 = scmp.eq.s32.totalorder %s35, 0
      %p142 = por %p140, %p141
      %p143 = scmp.ne.s32.totalorder %s132, %s135
      %p144 = scmp.eq.s32.totalorder %s40, 1
      %p145 = por %p143, %p144
      %p146 = scmp.ne.s32.totalorder %s135, %s136
      %p147 = scmp.eq.s32.totalorder %s40, 0
      %p148 = por %p146, %p147
      %p149 = scmp.ne.s32.totalorder %s135, %s136
      %p150 = scmp.eq.s32.totalorder %s41, 1
      %p151 = por %p149, %p150
      %p153 = scmp.ne.s32.totalorder %s136, %s152
      %p154 = scmp.eq.s32.totalorder %s41, 0
      %p155 = por %p153, %p154
      %s157 = sadd.s32 %s156, 1
      %p160 = scmp.eq.s32.totalorder %s35, 1
      %p161 = scmp.ne.s32.totalorder %s156, %s158
      %p162 = scmp.eq.s32.totalorder %s35, 0
      %p163 = por %p161, %p162
      %p164 = scmp.ne.s32.totalorder %s156, %s158
      %p165 = scmp.eq.s32.totalorder %s40, 1
      %p166 = por %p164, %p165
      %p167 = scmp.ne.s32.totalorder %s158, %s159
      %p168 = scmp.eq.s32.totalorder %s40, 0
      %p169 = por %p167, %p168
      %p170 = scmp.ne.s32.totalorder %s158, %s159
      %p171 = scmp.eq.s32.totalorder %s41, 1
      %p172 = por %p170, %p171
      %p174 = scmp.ne.s32.totalorder %s159, %s173
      %p175 = scmp.eq.s32.totalorder %s41, 0
      %p176 = por %p174, %p175
      %s178 = sadd.s32 %s177, 1
      %p181 = scmp.eq.s32.totalorder %s35, 1
      %p182 = scmp.ne.s32.totalorder %s177, %s179
      %p183 = scmp.eq.s32.totalorder %s35, 0
      %p184 = por %p182, %p183
      %p185 = scmp.ne.s32.totalorder %s177, %s179
      %p186 = scmp.eq.s32.totalorder %s40, 1
      %p187 = por %p185, %p186
      %p188 = scmp.ne.s32.totalorder %s179, %s180
      %p189 = scmp.eq.s32.totalorder %s40, 0
      %p190 = por %p188, %p189
      %p191 = scmp.ne.s32.totalorder %s179, %s180
      %p192 = scmp.eq.s32.totalorder %s41, 1
      %p193 = por %p191, %p192
      %p195 = scmp.ne.s32.totalorder %s180, %s194
      %p196 = scmp.eq.s32.totalorder %s41, 0
      %p197 = por %p195, %p196
      %s199 = sadd.s32 %s198, 1
      %p202 = scmp.eq.s32.totalorder %s35, 1
      %p203 = scmp.ne.s32.totalorder %s198, %s200
      %p204 = scmp.eq.s32.totalorder %s35, 0
      %p205 = por %p203, %p204
      %p206 = scmp.ne.s32.totalorder %s198, %s200
      %p207 = scmp.eq.s32.totalorder %s40, 1
      %p208 = por %p206, %p207
      %p209 = scmp.ne.s32.totalorder %s200, %s201
      %p210 = scmp.eq.s32.totalorder %s40, 0
      %p211 = por %p209, %p210
      %p212 = scmp.ne.s32.totalorder %s200, %s201
      %p213 = scmp.eq.s32.totalorder %s41, 1
      %p214 = por %p212, %p213
      %p216 = scmp.ne.s32.totalorder %s201, %s215
      %p217 = scmp.eq.s32.totalorder %s41, 0
      %p218 = por %p216, %p217
      %s220 = sadd.s32 %s219, 1
      %p223 = scmp.eq.s32.totalorder %s35, 1
      %p224 = scmp.ne.s32.totalorder %s219, %s221
      %p225 = scmp.eq.s32.totalorder %s35, 0
      %p226 = por %p224, %p225
      %p227 = scmp.ne.s32.totalorder %s219, %s221
      %p228 = scmp.eq.s32.totalorder %s40, 1
      %p229 = por %p227, %p228
      %p230 = scmp.ne.s32.totalorder %s221, %s222
      %p231 = scmp.eq.s32.totalorder %s40, 0
      %p232 = por %p230, %p231
      %p233 = scmp.ne.s32.totalorder %s221, %s222
      %p234 = scmp.eq.s32.totalorder %s41, 1
      %p235 = por %p233, %p234
      %p237 = scmp.ne.s32.totalorder %s222, %s236
      %p238 = scmp.eq.s32.totalorder %s41, 0
      %p239 = por %p237, %p238
      %s241 = sadd.s32 %s240, 1
      %p244 = scmp.eq.s32.totalorder %s35, 1
      %p245 = scmp.ne.s32.totalorder %s240, %s242
      %p246 = scmp.eq.s32.totalorder %s35, 0
      %p247 = por %p245, %p246
      %p248 = scmp.ne.s32.totalorder %s240, %s242
      %p249 = scmp.eq.s32.totalorder %s40, 1
      %p250 = por %p248, %p249
      %p251 = scmp.ne.s32.totalorder %s242, %s243
      %p252 = scmp.eq.s32.totalorder %s40, 0
      %p253 = por %p251, %p252
      %p254 = scmp.ne.s32.totalorder %s242, %s243
      %p255 = scmp.eq.s32.totalorder %s41, 1
      %p256 = por %p254, %p255
      %p258 = scmp.ne.s32.totalorder %s243, %s257
      %p259 = scmp.eq.s32.totalorder %s41, 0
      %p260 = por %p258, %p259
      %s262 = sadd.s32 %s261, 1
      %p265 = scmp.eq.s32.totalorder %s35, 1
      %p266 = scmp.ne.s32.totalorder %s261, %s263
      %p267 = scmp.eq.s32.totalorder %s35, 0
      %p268 = por %p266, %p267
      %p269 = scmp.ne.s32.totalorder %s261, %s263
      %p270 = scmp.eq.s32.totalorder %s40, 1
      %p271 = por %p269, %p270
      %p272 = scmp.ne.s32.totalorder %s263, %s264
      %p273 = scmp.eq.s32.totalorder %s40, 0
      %p274 = por %p272, %p273
      %p275 = scmp.ne.s32.totalorder %s263, %s264
      %p276 = scmp.eq.s32.totalorder %s41, 1
      %p277 = por %p275, %p276
      %p279 = scmp.ne.s32.totalorder %s264, %s278
      %p280 = scmp.eq.s32.totalorder %s41, 0
      %p281 = por %p279, %p280
      %s283 = sadd.s32 %s282, 1
      %p286 = scmp.eq.s32.totalorder %s35, 1
      %p287 = scmp.ne.s32.totalorder %s282, %s284
      %p288 = scmp.eq.s32.totalorder %s35, 0
      %p289 = por %p287, %p288
      %p290 = scmp.ne.s32.totalorder %s282, %s284
      %p291 = scmp.eq.s32.totalorder %s40, 1
      %p292 = por %p290, %p291
      %p293 = scmp.ne.s32.totalorder %s284, %s285
      %p294 = scmp.eq.s32.totalorder %s40, 0
      %p295 = por %p293, %p294
      %p296 = scmp.ne.s32.totalorder %s284, %s285
      %p297 = scmp.eq.s32.totalorder %s41, 1
      %p298 = por %p296, %p297
      %p300 = scmp.ne.s32.totalorder %s285, %s299
      %p301 = scmp.eq.s32.totalorder %s41, 0
      %p302 = por %p300, %p301
      %s304 = sadd.s32 %s303, 1
      %p307 = scmp.eq.s32.totalorder %s35, 1
      %p308 = scmp.ne.s32.totalorder %s303, %s305
      %p309 = scmp.eq.s32.totalorder %s35, 0
      %p310 = por %p308, %p309
      %p311 = scmp.ne.s32.totalorder %s303, %s305
      %p312 = scmp.eq.s32.totalorder %s40, 1
      %p313 = por %p311, %p312
      %p314 = scmp.ne.s32.totalorder %s305, %s306
      %p315 = scmp.eq.s32.totalorder %s40, 0
      %p316 = por %p314, %p315
      %p317 = scmp.ne.s32.totalorder %s305, %s306
      %p318 = scmp.eq.s32.totalorder %s41, 1
      %p319 = por %p317, %p318
      %p321 = scmp.ne.s32.totalorder %s306, %s320
      %p322 = scmp.eq.s32.totalorder %s41, 0
      %p323 = por %p321, %p322
      %s324 = ssub.s32 %s42, %s54
      %s325 = ssub.s32 %s43, %s50
      %s326 = sor.u32 %s324, %s325
      %p327 = scmp.eq.s32.totalorder %s326, 0
      %s329 = sadd.s32 %s328, 1
      %s330 = scalar_select %p327, %s328, %s329
      %p333 = pneg %p327
      %p334 = scmp.eq.s32.totalorder %s35, 1
      %p335 = por %p333, %p334
      %p336 = scmp.ne.s32.totalorder %s328, %s331
      %p337 = scmp.eq.s32.totalorder %s35, 0
      %p338 = por %p336, %p337
      %p339 = scmp.ne.s32.totalorder %s328, %s331
      %p340 = scmp.eq.s32.totalorder %s40, 1
      %p341 = por %p339, %p340
      %p342 = scmp.ne.s32.totalorder %s331, %s332
      %p343 = scmp.eq.s32.totalorder %s40, 0
      %p344 = por %p342, %p343
      %p345 = scmp.ne.s32.totalorder %s331, %s332
      %p346 = scmp.eq.s32.totalorder %s41, 1
      %p347 = por %p345, %p346
      %p349 = scmp.ne.s32.totalorder %s332, %s348
      %p350 = scmp.eq.s32.totalorder %s41, 0
      %p351 = por %p349, %p350
      %s352 = ssub.s32 %s42, %s54
      %s353 = ssub.s32 %s43, %s50
      %s354 = sor.u32 %s352, %s353
      %p355 = scmp.eq.s32.totalorder %s354, 0
      %s357 = sadd.s32 %s356, 1
      %s358 = scalar_select %p355, %s356, %s357
      %p361 = pneg %p355
      %p362 = scmp.eq.s32.totalorder %s35, 1
      %p363 = por %p361, %p362
      %p364 = scmp.ne.s32.totalorder %s356, %s359
      %p365 = scmp.eq.s32.totalorder %s35, 0
      %p366 = por %p364, %p365
      %p367 = scmp.ne.s32.totalorder %s356, %s359
      %p368 = scmp.eq.s32.totalorder %s40, 1
      %p369 = por %p367, %p368
      %p370 = scmp.ne.s32.totalorder %s359, %s360
      %p371 = scmp.eq.s32.totalorder %s40, 0
      %p372 = por %p370, %p371
      %p373 = scmp.ne.s32.totalorder %s359, %s360
      %p374 = scmp.eq.s32.totalorder %s41, 1
      %p375 = por %p373, %p374
      %p377 = scmp.ne.s32.totalorder %s360, %s376
      %p378 = scmp.eq.s32.totalorder %s41, 0
      %p379 = por %p377, %p378
      %p380 = scmp.le.s32.totalorder 1, %s35
      %p381 = scmp.lt.s32.totalorder %s35, 3
      %p382 = pnand %p380, %p381
      %p383 = pneg %p382
      // Predicated region
      $region9: #{tpu_custom_call.1} parent=5 // pred_check
        _
      $region10: #{tpu_custom_call.1} parent=5 // pred_check_branch
        %385 = sbr.rel (%p382) target = $region12
      $region11: #{tpu_custom_call.1} parent=5 // pred_region
        %s386 = ssub.s32 %s35, 1
        // Predicated region
        $region13: #{tpu_custom_call.1} parent=11 // pred_check
          %p387 = pneg %p68
        $region14: #{tpu_custom_call.1} parent=11 // pred_check_branch
          %389 = sbr.rel (%p387) target = $region16
        $region15: #{tpu_custom_call.1} parent=11 // pred_region
          _
        $region16: #{tpu_custom_call.1} parent=11 // pred_fallthru
          _
        // Predicated region
        $region17: #{tpu_custom_call.1} parent=11 // pred_check
          %p390 = pneg %p169
        $region18: #{tpu_custom_call.1} parent=11 // pred_check_branch
          %392 = sbr.rel (%p390) target = $region20
        $region19: #{tpu_custom_call.1} parent=11 // pred_region
          %s394 = ssub.s32 256, 256
          %395 = vsyncadd [#allocation12], %s394
          %s396 = sshll.u32 [#allocation11], 4
          %s397 = int_to_ptr.vmem [resolvable:$true] %s396
          %402 = dma.hbm_to_vmem [thread:$0]  %s4, 256, %s397, [#allocation12], 64, 64, 4
        $region20: #{tpu_custom_call.1} parent=11 // pred_fallthru
          _
        // Predicated region
        $region21: #{tpu_custom_call.1} parent=11 // pred_check
          %p403 = pneg %p190
        $region22: #{tpu_custom_call.1} parent=11 // pred_check_branch
          %405 = sbr.rel (%p403) target = $region24
        $region23: #{tpu_custom_call.1} parent=11 // pred_region
          _
        $region24: #{tpu_custom_call.1} parent=11 // pred_fallthru
          _
        // Predicated region
        $region25: #{tpu_custom_call.1} parent=11 // pred_check
          %p406 = pneg %p211
        $region26: #{tpu_custom_call.1} parent=11 // pred_check_branch
          %408 = sbr.rel (%p406) target = $region28
        $region27: #{tpu_custom_call.1} parent=11 // pred_region
          _
        $region28: #{tpu_custom_call.1} parent=11 // pred_fallthru
          _
        // Predicated region
        $region29: #{tpu_custom_call.1} parent=11 // pred_check
          %p409 = pneg %p232
        $region30: #{tpu_custom_call.1} parent=11 // pred_check_branch
          %411 = sbr.rel (%p409) target = $region32
        $region31: #{tpu_custom_call.1} parent=11 // pred_region
          _
        $region32: #{tpu_custom_call.1} parent=11 // pred_fallthru
          _
        // Predicated region
        $region33: #{tpu_custom_call.1} parent=11 // pred_check
          %p412 = pneg %p253
        $region34: #{tpu_custom_call.1} parent=11 // pred_check_branch
          %414 = sbr.rel (%p412) target = $region36
        $region35: #{tpu_custom_call.1} parent=11 // pred_region
          %s416 = ssub.s32 256, 256
          %417 = vsyncadd [#allocation12], %s416
          %s418 = sshll.u32 [#allocation13], 4
          %s419 = int_to_ptr.vmem [resolvable:$true] %s418
          %424 = dma.hbm_to_vmem [thread:$0]  %s8, 256, %s419, [#allocation12], 64, 64, 4
        $region36: #{tpu_custom_call.1} parent=11 // pred_fallthru
          _
        // Predicated region
        $region37: #{tpu_custom_call.1} parent=11 // pred_check
          %p425 = pneg %p274
        $region38: #{tpu_custom_call.1} parent=11 // pred_check_branch
          %427 = sbr.rel (%p425) target = $region40
        $region39: #{tpu_custom_call.1} parent=11 // pred_region
          %s429 = ssub.s32 16, 16
          %430 = vsyncadd [#allocation15], %s429
          %s432 = sshll.u32 [#allocation14], 4
          %s433 = int_to_ptr.vmem [resolvable:$true] %s432
          %435 = dma.hbm_to_vmem [thread:$0]  %s9, 16, %s433, [#allocation15]
        $region40: #{tpu_custom_call.1} parent=11 // pred_fallthru
          _
        // Predicated region
        $region41: #{tpu_custom_call.1} parent=11 // pred_check
          %p436 = pneg %p295
        $region42: #{tpu_custom_call.1} parent=11 // pred_check_branch
          %438 = sbr.rel (%p436) target = $region44
        $region43: #{tpu_custom_call.1} parent=11 // pred_region
          _
        $region44: #{tpu_custom_call.1} parent=11 // pred_fallthru
          _
        // Predicated region
        $region45: #{tpu_custom_call.1} parent=11 // pred_check
          %p439 = pneg %p316
        $region46: #{tpu_custom_call.1} parent=11 // pred_check_branch
          %441 = sbr.rel (%p439) target = $region48
        $region47: #{tpu_custom_call.1} parent=11 // pred_region
          _
        $region48: #{tpu_custom_call.1} parent=11 // pred_fallthru
          _
      $region12: #{tpu_custom_call.1} parent=5 // pred_fallthru
        _
      %p442 = scmp.lt.s32.totalorder %s35, 2
      // Predicated region
      $region49: #{tpu_custom_call.1} parent=5 // pred_check
        %p443 = pneg %p442
      $region50: #{tpu_custom_call.1} parent=5 // pred_check_branch
        %445 = sbr.rel (%p443) target = $region52
      $region51: #{tpu_custom_call.1} parent=5 // pred_region
        // Predicated region
        $region53: #{tpu_custom_call.1} parent=51 // pred_check
          %p446 = pneg %p90
        $region54: #{tpu_custom_call.1} parent=51 // pred_check_branch
          %448 = sbr.rel (%p446) target = $region56
        $region55: #{tpu_custom_call.1} parent=51 // pred_region
          %s449 = sand.u32 %s80, 1
          %s450 = scalar_lea.sflag [#allocation6], %s449
          %s451 = sand.u32 %s80, 1
          %s452 = smul.addr %s451, 4
          %s453 = scalar_lea.vmem [#allocation5], %s452
          %s455 = ssub.s32 64, 64
          %456 = vsyncadd %s450, %s455
          %s457 = sadd.s32 %s43, %s42
          %s458 = smul.addr %s457, 64
          %s459 = scalar_lea.hbm %s1, %s458
          %s461 = sshll.u32 %s453, 4
          %s462 = int_to_ptr.vmem [resolvable:$true] %s461
          %464 = dma.hbm_to_vmem [thread:$0]  %s459, 64, %s462, %s450
        $region56: #{tpu_custom_call.1} parent=51 // pred_fallthru
          _
        // Predicated region
        $region57: #{tpu_custom_call.1} parent=51 // pred_check
          %p465 = pneg %p116
        $region58: #{tpu_custom_call.1} parent=51 // pred_check_branch
          %467 = sbr.rel (%p465) target = $region60
        $region59: #{tpu_custom_call.1} parent=51 // pred_region
          %s468 = sand.u32 %s35, 1
          %s469 = scalar_lea.sflag [#allocation9], %s468
          %s470 = sand.u32 %s106, 1
          %s471 = smul.addr %s470, 4
          %s472 = scalar_lea.vmem [#allocation8], %s471
          %s474 = ssub.s32 64, 64
          %475 = vsyncadd %s469, %s474
          %s476 = smul.addr %s42, 64
          %s477 = scalar_lea.hbm %s2, %s476
          %s479 = sshll.u32 %s472, 4
          %s480 = int_to_ptr.vmem [resolvable:$true] %s479
          %482 = dma.hbm_to_vmem [thread:$0]  %s477, 64, %s480, %s469
        $region60: #{tpu_custom_call.1} parent=51 // pred_fallthru
          _
        // Predicated region
        $region61: #{tpu_custom_call.1} parent=51 // pred_check
          %p483 = pneg %p142
        $region62: #{tpu_custom_call.1} parent=51 // pred_check_branch
          %485 = sbr.rel (%p483) target = $region64
        $region63: #{tpu_custom_call.1} parent=51 // pred_region
          %s486 = sand.u32 %s35, 1
          %s487 = scalar_lea.sflag [#allocation9], %s486
          %s488 = sand.u32 %s132, 1
          %s489 = smul.addr %s488, 4
          %s490 = scalar_lea.vmem [#allocation10], %s489
          %s492 = ssub.s32 64, 64
          %493 = vsyncadd %s487, %s492
          %s494 = smul.addr %s42, 64
          %s495 = scalar_lea.hbm %s3, %s494
          %s497 = sshll.u32 %s490, 4
          %s498 = int_to_ptr.vmem [resolvable:$true] %s497
          %500 = dma.hbm_to_vmem [thread:$0]  %s495, 64, %s498, %s487
        $region64: #{tpu_custom_call.1} parent=51 // pred_fallthru
          _
      $region52: #{tpu_custom_call.1} parent=5 // pred_fallthru
        _
      %p501 = scmp.le.s32.totalorder 1, %s35
      %p502 = scmp.lt.s32.totalorder %s35, 3
      %p503 = pnand %p501, %p502
      %p504 = pneg %p503
      // Predicated region
      $region65: #{tpu_custom_call.1} parent=5 // pred_check
        _
      $region66: #{tpu_custom_call.1} parent=5 // pred_check_branch
        %506 = sbr.rel (%p503) target = $region68
      $region67: #{tpu_custom_call.1} parent=5 // pred_region
        %s507 = ssub.s32 %s35, 1
        %s508 = sand.u32 %s83, 1
        %s509 = scalar_lea.sflag [#allocation6], %s508
        %s510 = sand.u32 %s83, 1
        %s511 = smul.addr %s510, 4
        %s512 = scalar_lea.vmem [#allocation5], %s511
        // Predicated region
        $region69: #{tpu_custom_call.1} parent=67 // pred_check
          %p513 = pneg %p96
        $region70: #{tpu_custom_call.1} parent=67 // pred_check_branch
          %515 = sbr.rel (%p513) target = $region72
        $region71: #{tpu_custom_call.1} parent=67 // pred_region
          %516 = dma.done %s509, 64
        $region72: #{tpu_custom_call.1} parent=67 // pred_fallthru
          _
        %s517 = sand.u32 %s40, 1
        %s518 = scalar_lea.sflag [#allocation9], %s517
        %s519 = sand.u32 %s109, 1
        %s520 = smul.addr %s519, 4
        %s521 = scalar_lea.vmem [#allocation8], %s520
        // Predicated region
        $region73: #{tpu_custom_call.1} parent=67 // pred_check
          %p522 = pneg %p122
        $region74: #{tpu_custom_call.1} parent=67 // pred_check_branch
          %524 = sbr.rel (%p522) target = $region76
        $region75: #{tpu_custom_call.1} parent=67 // pred_region
          %525 = dma.done %s518, 64
        $region76: #{tpu_custom_call.1} parent=67 // pred_fallthru
          _
        %s526 = sand.u32 %s40, 1
        %s527 = scalar_lea.sflag [#allocation9], %s526
        %s528 = sand.u32 %s135, 1
        %s529 = smul.addr %s528, 4
        %s530 = scalar_lea.vmem [#allocation10], %s529
        // Predicated region
        $region77: #{tpu_custom_call.1} parent=67 // pred_check
          %p531 = pneg %p148
        $region78: #{tpu_custom_call.1} parent=67 // pred_check_branch
          %533 = sbr.rel (%p531) target = $region80
        $region79: #{tpu_custom_call.1} parent=67 // pred_region
          %534 = dma.done %s527, 64
        $region80: #{tpu_custom_call.1} parent=67 // pred_fallthru
          _
        // Predicated region
        $region81: #{tpu_custom_call.1} parent=67 // pred_check
          %p535 = pneg %p169
        $region82: #{tpu_custom_call.1} parent=67 // pred_check_branch
          %537 = sbr.rel (%p535) target = $region84
        $region83: #{tpu_custom_call.1} parent=67 // pred_region
          %538 = dma.done [#allocation12], 256
        $region84: #{tpu_custom_call.1} parent=67 // pred_fallthru
          _
        // Predicated region
        $region85: #{tpu_custom_call.1} parent=67 // pred_check
          %p539 = pneg %p253
        $region86: #{tpu_custom_call.1} parent=67 // pred_check_branch
          %541 = sbr.rel (%p539) target = $region88
        $region87: #{tpu_custom_call.1} parent=67 // pred_region
          %542 = dma.done [#allocation12], 256
        $region88: #{tpu_custom_call.1} parent=67 // pred_fallthru
          _
        // Predicated region
        $region89: #{tpu_custom_call.1} parent=67 // pred_check
          %p543 = pneg %p274
        $region90: #{tpu_custom_call.1} parent=67 // pred_check_branch
          %545 = sbr.rel (%p543) target = $region92
        $region91: #{tpu_custom_call.1} parent=67 // pred_region
          %546 = dma.done [#allocation15], 16
        $region92: #{tpu_custom_call.1} parent=67 // pred_fallthru
          _
        %p547 = pneg %p68
        %p548 = pneg %p65
        %s549 = sand.u32 %s83, 1
        %s550 = scalar_lea.sflag [#allocation6], %s549
        %s551 = sand.u32 %s83, 1
        %s552 = smul.addr %s551, 4
        %s553 = scalar_lea.vmem [#allocation5], %s552
        %p554 = pneg %p96
        %p555 = pneg %p93
        %s556 = sand.u32 %s40, 1
        %s557 = scalar_lea.sflag [#allocation9], %s556
        %s558 = sand.u32 %s109, 1
        %s559 = smul.addr %s558, 4
        %s560 = scalar_lea.vmem [#allocation8], %s559
        %p561 = pneg %p122
        %p562 = pneg %p119
        %s563 = sand.u32 %s40, 1
        %s564 = scalar_lea.sflag [#allocation9], %s563
        %s565 = sand.u32 %s135, 1
        %s566 = smul.addr %s565, 4
        %s567 = scalar_lea.vmem [#allocation10], %s566
        %p568 = pneg %p148
        %p569 = pneg %p145
        %p570 = pneg %p169
        %p571 = pneg %p166
        %p572 = pneg %p190
        %p573 = pneg %p187
        %p574 = pneg %p211
        %p575 = pneg %p208
        %p576 = pneg %p232
        %p577 = pneg %p229
        %p578 = pneg %p253
        %p579 = pneg %p250
        %p580 = pneg %p274
        %p581 = pneg %p271
        %p582 = pneg %p295
        %p583 = pneg %p292
        %p584 = pneg %p316
        %p585 = pneg %p313
        %p586 = pneg %p344
        %p587 = pneg %p341
        %s588 = sand.u32 %s331, 1
        %s589 = scalar_lea.sflag [#allocation7], %s588
        %s590 = sand.u32 %s331, 1
        %s591 = smul.addr %s590, 8
        %s592 = scalar_lea.vmem [#allocation16], %s591
        %p593 = pneg %p372
        %p594 = pneg %p369
        %s595 = sand.u32 %s359, 1
        %s596 = scalar_lea.sflag [#allocation18], %s595
        %s597 = sand.u32 %s359, 1
        %s598 = smul.addr %s597, 16
        %s599 = scalar_lea.vmem [#allocation17], %s598
        %p601 = scmp.eq.s32.totalorder %s45, 0
        // Predicated region
        $region93: #{tpu_custom_call.1} parent=67 // pred_check
          %p602 = pneg %p601
        $region94: #{tpu_custom_call.1} parent=67 // pred_check_branch
          %604 = sbr.rel (%p602) target = $region96
        $region95: #{tpu_custom_call.1} parent=67 // pred_region
          %v605 = vld [vmem:[%s521] sm:$0xf]
          %v606 = vld [vmem:[%s6] sm:$0xf]
          %v607 = vld [vmem:[%s6 + $0x4] sm:$0xf]
          %v608 = vld [vmem:[%s6 + $0x8] sm:$0xf]
          %v609 = vld [vmem:[%s6 + $0xc] sm:$0xf]
          %v610 = vld [vmem:[%s7] sm:$0x1]
          %v612 = vlaneseq
          %v613 = vshrl.u32 %v612, 7
          %v614 = vsub.s32 0, %v613
          %v615 = vrot.slane %v610, %v614
          %v621 = vunpack.c.l.b16 %v606
          %v622 = vunpack.c.l.b16 %v607
          %v623 = vunpack.c.l.b16 %v608
          %v624 = vunpack.c.l.b16 %v609
          %v625 = vpack.c.b16 %v622, %v621
          %v626 = vpack.c.b16 %v624, %v623
          %vm629 = vcmask 261120
          %v631 = vsel %vm629, %v605, 0
          %633 = vmatprep.subr.bf16.mxu0 0
          %634 = vmatpush1.bf16.msra.mxu0 %v625
          %635 = vmatprep.subr.bf16.mxu0 0
          %636 = vmatpush1.bf16.msra.mxu0 %v626
          %637 = vmatprep.subr.bf16.mxu0 0
          %638 = vmatpush1.bf16.msra.mxu0 0
          %639 = vmatprep.subr.bf16.mxu0 0
          %640 = vmatpush1.bf16.msra.mxu0 0
          %641 = vmatprep.subr.bf16.mxu0 0
          %642 = vmatpush1.bf16.msra.mxu0 0
          %643 = vmatprep.subr.bf16.mxu0 0
          %644 = vmatpush1.bf16.msra.mxu0 0
          %645 = vmatprep.subr.bf16.mxu0 0
          %646 = vmatpush1.bf16.msra.mxu0 0
          %647 = vmatprep.subr.bf16.mxu0 0
          %648 = vmatpush1.bf16.msra.mxu0 0
          %649 = vmatprep.subr.bf16.mxu0 0
          %650 = vmatpush1.bf16.msra.mxu0 0
          %651 = vmatprep.subr.bf16.mxu0 0
          %652 = vmatpush1.bf16.msra.mxu0 0
          %653 = vmatprep.subr.bf16.mxu0 0
          %654 = vmatpush1.bf16.msra.mxu0 0
          %655 = vmatprep.subr.bf16.mxu0 0
          %656 = vmatpush1.bf16.msra.mxu0 0
          %657 = vmatprep.subr.bf16.mxu0 0
          %658 = vmatpush1.bf16.msra.mxu0 0
          %659 = vmatprep.subr.bf16.mxu0 0
          %660 = vmatpush1.bf16.msra.mxu0 0
          %661 = vmatprep.subr.bf16.mxu0 0
          %662 = vmatpush1.bf16.msra.mxu0 0
          %663 = vmatprep.subr.bf16.mxu0 0
          %664 = vmatpush1.bf16.msra.mxu0 0
          %665 = vmatprep.mubr.bf16.mxu0 0
          %666 = vmatmul.mubr.bf16.gmra.mrb[0].mxu0 %v631
          %v667 = vpop.f32.mrb[0].mxu0
          %v668 = vadd.f32 %v615, %v667
          %v669 = vpop.f32.mrb[0].mxu0
          %v670 = vpop.f32.mrb[0].mxu0
          %v671 = vpop.f32.mrb[0].mxu0
          %672 = vdwg.mxu0
          %v673 = vld [vmem:[%s530] sm:$0xf]
          %v674 = vld [vmem:[#allocation13] sm:$0xf]
          %v675 = vld [vmem:[#allocation13 + $0x4] sm:$0xf]
          %v676 = vld [vmem:[#allocation13 + $0x8] sm:$0xf]
          %v677 = vld [vmem:[#allocation13 + $0xc] sm:$0xf]
          %v678 = vld [vmem:[#allocation14] sm:$0x1]
          %v680 = vlaneseq
          %v681 = vshrl.u32 %v680, 7
          %v682 = vsub.s32 0, %v681
          %v683 = vrot.slane %v678, %v682
          %v689 = vunpack.c.l.b16 %v674
          %v690 = vunpack.c.l.b16 %v675
          %v691 = vunpack.c.l.b16 %v676
          %v692 = vunpack.c.l.b16 %v677
          %v693 = vpack.c.b16 %v690, %v689
          %v694 = vpack.c.b16 %v692, %v691
          %v698 = vsel %vm629, %v673, 0
          %700 = vmatprep.subr.bf16.mxu0 0
          %701 = vmatpush1.bf16.msra.mxu0 %v693
          %702 = vmatprep.subr.bf16.mxu0 0
          %703 = vmatpush1.bf16.msra.mxu0 %v694
          %704 = vmatprep.subr.bf16.mxu0 0
          %705 = vmatpush1.bf16.msra.mxu0 0
          %706 = vmatprep.subr.bf16.mxu0 0
          %707 = vmatpush1.bf16.msra.mxu0 0
          %708 = vmatprep.subr.bf16.mxu0 0
          %709 = vmatpush1.bf16.msra.mxu0 0
          %710 = vmatprep.subr.bf16.mxu0 0
          %711 = vmatpush1.bf16.msra.mxu0 0
          %712 = vmatprep.subr.bf16.mxu0 0
          %713 = vmatpush1.bf16.msra.mxu0 0
          %714 = vmatprep.subr.bf16.mxu0 0
          %715 = vmatpush1.bf16.msra.mxu0 0
          %716 = vmatprep.subr.bf16.mxu0 0
          %717 = vmatpush1.bf16.msra.mxu0 0
          %718 = vmatprep.subr.bf16.mxu0 0
          %719 = vmatpush1.bf16.msra.mxu0 0
          %720 = vmatprep.subr.bf16.mxu0 0
          %721 = vmatpush1.bf16.msra.mxu0 0
          %722 = vmatprep.subr.bf16.mxu0 0
          %723 = vmatpush1.bf16.msra.mxu0 0
          %724 = vmatprep.subr.bf16.mxu0 0
          %725 = vmatpush1.bf16.msra.mxu0 0
          %726 = vmatprep.subr.bf16.mxu0 0
          %727 = vmatpush1.bf16.msra.mxu0 0
          %728 = vmatprep.subr.bf16.mxu0 0
          %729 = vmatpush1.bf16.msra.mxu0 0
          %730 = vmatprep.subr.bf16.mxu0 0
          %731 = vmatpush1.bf16.msra.mxu0 0
          %732 = vmatprep.mubr.bf16.mxu0 0
          %733 = vmatmul.mubr.bf16.gmra.mrb[0].mxu0 %v698
          %v734 = vpop.f32.mrb[0].mxu0
          %v735 = vadd.f32 %v683, %v734
          %v736 = vpop.f32.mrb[0].mxu0
          %v737 = vpop.f32.mrb[0].mxu0
          %v738 = vpop.f32.mrb[0].mxu0
          %739 = vdwg.mxu0
          %v740 = vpack.c.bf16 %v668, %v668
          %vm741 = vcmask 257024
          %742 = vst.msk [vmem:[#allocation2] sm:$0xf] %vm741, %v740
          %v743 = vpack.c.bf16 %v735, %v735
          %744 = vst.msk [vmem:[#allocation3] sm:$0xf] %vm741, %v743
        $region96: #{tpu_custom_call.1} parent=67 // pred_fallthru
          _
        %v745 = vld [vmem:[%s512] sm:$0xf]
        %v746 = vld [vmem:[#allocation11] sm:$0xf]
        %v747 = vld [vmem:[#allocation11 + $0x4] sm:$0xf]
        %v748 = vld [vmem:[#allocation11 + $0x8] sm:$0xf]
        %v749 = vld [vmem:[#allocation11 + $0xc] sm:$0xf]
        %v750 = vld [vmem:[%s5] sm:$0x1]
        %v752 = vlaneseq
        %v753 = vshrl.u32 %v752, 7
        %v754 = vsub.s32 0, %v753
        %v755 = vrot.slane %v750, %v754
        %v761 = vunpack.c.l.b16 %v746
        %v762 = vunpack.c.l.b16 %v747
        %v763 = vunpack.c.l.b16 %v748
        %v764 = vunpack.c.l.b16 %v749
        %v765 = vpack.c.b16 %v762, %v761
        %v766 = vpack.c.b16 %v764, %v763
        %vm769 = vcmask 261120
        %v771 = vsel %vm769, %v745, 0
        %773 = vmatprep.subr.bf16.mxu0 0
        %774 = vmatpush1.bf16.msra.mxu0 %v765
        %775 = vmatprep.subr.bf16.mxu0 0
        %776 = vmatpush1.bf16.msra.mxu0 %v766
        %777 = vmatprep.subr.bf16.mxu0 0
        %778 = vmatpush1.bf16.msra.mxu0 0
        %779 = vmatprep.subr.bf16.mxu0 0
        %780 = vmatpush1.bf16.msra.mxu0 0
        %781 = vmatprep.subr.bf16.mxu0 0
        %782 = vmatpush1.bf16.msra.mxu0 0
        %783 = vmatprep.subr.bf16.mxu0 0
        %784 = vmatpush1.bf16.msra.mxu0 0
        %785 = vmatprep.subr.bf16.mxu0 0
        %786 = vmatpush1.bf16.msra.mxu0 0
        %787 = vmatprep.subr.bf16.mxu0 0
        %788 = vmatpush1.bf16.msra.mxu0 0
        %789 = vmatprep.subr.bf16.mxu0 0
        %790 = vmatpush1.bf16.msra.mxu0 0
        %791 = vmatprep.subr.bf16.mxu0 0
        %792 = vmatpush1.bf16.msra.mxu0 0
        %793 = vmatprep.subr.bf16.mxu0 0
        %794 = vmatpush1.bf16.msra.mxu0 0
        %795 = vmatprep.subr.bf16.mxu0 0
        %796 = vmatpush1.bf16.msra.mxu0 0
        %797 = vmatprep.subr.bf16.mxu0 0
        %798 = vmatpush1.bf16.msra.mxu0 0
        %799 = vmatprep.subr.bf16.mxu0 0
        %800 = vmatpush1.bf16.msra.mxu0 0
        %801 = vmatprep.subr.bf16.mxu0 0
        %802 = vmatpush1.bf16.msra.mxu0 0
        %803 = vmatprep.subr.bf16.mxu0 0
        %804 = vmatpush1.bf16.msra.mxu0 0
        %805 = vmatprep.mubr.bf16.mxu0 0
        %806 = vmatmul.mubr.bf16.gmra.mrb[0].mxu0 %v771
        %v807 = vpop.f32.mrb[0].mxu0
        %v808 = vadd.f32 %v755, %v807
        %v809 = vpop.f32.mrb[0].mxu0
        %v810 = vpop.f32.mrb[0].mxu0
        %v811 = vpop.f32.mrb[0].mxu0
        %812 = vdwg.mxu0
        %v813 = vpack.c.bf16 %v808, %v808
        %v814 = vld [vmem:[#allocation2] sm:$0xf]
        %v815 = vld [vmem:[#allocation3] sm:$0xf]
        %s816 = sld [smem:[#allocation4]]
        %v817 = vunpack.c.l.bf16 %v814
        %v818 = vstv %s816
        %v819 = vmul.f32 %v817, %v818
        %v820 = vpack.c.bf16 %v819, %v819
        %822 = vrot.lane.b32.xlu0 %v820, 8
        %v823 = vpop.permute.xlu0 %822
        %vm824 = vcmask 64512
        %v827 = vsel %vm824, %v813, %v823
        %v829 = vunpack.c.l.b16 %v815
        %v830 = vpack.c.b16 %v829, %v829
        %831 = vrot.lane.b32.xlu0 %v830, 8
        %v832 = vpop.permute.xlu0 %831
        %v835 = vsel %vm824, %v814, %v832
        %vm836 = vcmask 130048
        %v837 = vsel %vm836, %v827, 0
        %v839 = vsel %vm836, %v835, 0
        %841 = vmatprep.subr.bf16.mxu0 0
        %842 = vmatpush1.bf16.xpose.msra.mxu0 %v839
        %843 = vmatprep.subr.bf16.mxu0 0
        %844 = vmatpush1.bf16.xpose.msra.mxu0 0
        %845 = vmatprep.subr.bf16.mxu0 0
        %846 = vmatpush1.bf16.xpose.msra.mxu0 0
        %847 = vmatprep.subr.bf16.mxu0 0
        %848 = vmatpush1.bf16.xpose.msra.mxu0 0
        %849 = vmatprep.subr.bf16.mxu0 0
        %850 = vmatpush1.bf16.xpose.msra.mxu0 0
        %851 = vmatprep.subr.bf16.mxu0 0
        %852 = vmatpush1.bf16.xpose.msra.mxu0 0
        %853 = vmatprep.subr.bf16.mxu0 0
        %854 = vmatpush1.bf16.xpose.msra.mxu0 0
        %855 = vmatprep.subr.bf16.mxu0 0
        %856 = vmatpush1.bf16.xpose.msra.mxu0 0
        %857 = vmatprep.subr.bf16.mxu0 0
        %858 = vmatpush1.bf16.xpose.msra.mxu0 0
        %859 = vmatprep.subr.bf16.mxu0 0
        %860 = vmatpush1.bf16.xpose.msra.mxu0 0
        %861 = vmatprep.subr.bf16.mxu0 0
        %862 = vmatpush1.bf16.xpose.msra.mxu0 0
        %863 = vmatprep.subr.bf16.mxu0 0
        %864 = vmatpush1.bf16.xpose.msra.mxu0 0
        %865 = vmatprep.subr.bf16.mxu0 0
        %866 = vmatpush1.bf16.xpose.msra.mxu0 0
        %867 = vmatprep.subr.bf16.mxu0 0
        %868 = vmatpush1.bf16.xpose.msra.mxu0 0
        %869 = vmatprep.subr.bf16.mxu0 0
        %870 = vmatpush1.bf16.xpose.msra.mxu0 0
        %871 = vmatprep.subr.bf16.mxu0 0
        %872 = vmatpush1.bf16.xpose.msra.mxu0 0
        %873 = vmatprep.mubr.bf16.mxu0 0
        %874 = vmatmul.mubr.bf16.gmra.mrb[0].mxu0 %v837
        %v875 = vpop.f32.mrb[0].mxu0
        %v876 = vadd.f32 0.0, %v875
        %v877 = vpop.f32.mrb[0].mxu0
        %v878 = vpop.f32.mrb[0].mxu0
        %v879 = vpop.f32.mrb[0].mxu0
        %880 = vdwg.mxu0
        %v881 = vsel %vm824, %v876, -inf
        %882 = vmax.xlane.f32.xlu0 %v881
        %v883 = vpop.xlane.xlu0 %882
        %v884 = vsub.f32 %v876, %v883
        %v885 = vmul.f32 %v884, 1.442695
        %v886 = vpow.pop %v885
        %v887 = vsel %vm824, %v886, 0.0
        %888 = vadd.xlane.f32.xlu0 %v887
        %v889 = vpop.xlane.xlu0 %888
        %v890 = vrcp.pop %v889
        %v891 = vmul.f32 %v886, %v890
        %v892 = vpack.c.bf16 %v891, %v891
        %vm893 = vcmask 60416
        %894 = vst.msk [vmem:[%s599] sm:$0xf] %vm893, %v892
        %v896 = vsel %vm824, %v892, 0
        %vm898 = vcmask 1043456
        %v900 = vsel %vm898, %v815, 0
        %902 = vmatprep.subr.bf16.mxu0 0
        %903 = vmatpush1.bf16.msra.mxu0 %v900
        %904 = vmatprep.subr.bf16.mxu0 0
        %905 = vmatpush1.bf16.msra.mxu0 0
        %906 = vmatprep.subr.bf16.mxu0 0
        %907 = vmatpush1.bf16.msra.mxu0 0
        %908 = vmatprep.subr.bf16.mxu0 0
        %909 = vmatpush1.bf16.msra.mxu0 0
        %910 = vmatprep.subr.bf16.mxu0 0
        %911 = vmatpush1.bf16.msra.mxu0 0
        %912 = vmatprep.subr.bf16.mxu0 0
        %913 = vmatpush1.bf16.msra.mxu0 0
        %914 = vmatprep.subr.bf16.mxu0 0
        %915 = vmatpush1.bf16.msra.mxu0 0
        %916 = vmatprep.subr.bf16.mxu0 0
        %917 = vmatpush1.bf16.msra.mxu0 0
        %918 = vmatprep.subr.bf16.mxu0 0
        %919 = vmatpush1.bf16.msra.mxu0 0
        %920 = vmatprep.subr.bf16.mxu0 0
        %921 = vmatpush1.bf16.msra.mxu0 0
        %922 = vmatprep.subr.bf16.mxu0 0
        %923 = vmatpush1.bf16.msra.mxu0 0
        %924 = vmatprep.subr.bf16.mxu0 0
        %925 = vmatpush1.bf16.msra.mxu0 0
        %926 = vmatprep.subr.bf16.mxu0 0
        %927 = vmatpush1.bf16.msra.mxu0 0
        %928 = vmatprep.subr.bf16.mxu0 0
        %929 = vmatpush1.bf16.msra.mxu0 0
        %930 = vmatprep.subr.bf16.mxu0 0
        %931 = vmatpush1.bf16.msra.mxu0 0
        %932 = vmatprep.subr.bf16.mxu0 0
        %933 = vmatpush1.bf16.msra.mxu0 0
        %934 = vmatprep.mubr.bf16.mxu0 0
        %935 = vmatmul.mubr.bf16.gmra.mrb[0].mxu0 %v896
        %v936 = vpop.f32.mrb[0].mxu0
        %v937 = vadd.f32 0.0, %v936
        %v938 = vpop.f32.mrb[0].mxu0
        %v939 = vpop.f32.mrb[0].mxu0
        %v940 = vpop.f32.mrb[0].mxu0
        %941 = vdwg.mxu0
        %v942 = vpack.c.bf16 %v937, %v937
        %944 = vrot.lane.b32.xlu0 %v813, 120
        %v945 = vpop.permute.xlu0 %944
        %v948 = vsel %vm824, %v945, %v820
        %v950 = vunpack.c.l.b16 %v814
        %v951 = vpack.c.b16 %v950, %v950
        %952 = vrot.lane.b32.xlu0 %v951, 120
        %v953 = vpop.permute.xlu0 %952
        %v955 = vsel %vm824, %v953, %v815
        %v956 = vsel %vm836, %v948, 0
        %v958 = vsel %vm836, %v955, 0
        %960 = vmatprep.subr.bf16.mxu0 0
        %961 = vmatpush1.bf16.xpose.msra.mxu0 %v958
        %962 = vmatprep.subr.bf16.mxu0 0
        %963 = vmatpush1.bf16.xpose.msra.mxu0 0
        %964 = vmatprep.subr.bf16.mxu0 0
        %965 = vmatpush1.bf16.xpose.msra.mxu0 0
        %966 = vmatprep.subr.bf16.mxu0 0
        %967 = vmatpush1.bf16.xpose.msra.mxu0 0
        %968 = vmatprep.subr.bf16.mxu0 0
        %969 = vmatpush1.bf16.xpose.msra.mxu0 0
        %970 = vmatprep.subr.bf16.mxu0 0
        %971 = vmatpush1.bf16.xpose.msra.mxu0 0
        %972 = vmatprep.subr.bf16.mxu0 0
        %973 = vmatpush1.bf16.xpose.msra.mxu0 0
        %974 = vmatprep.subr.bf16.mxu0 0
        %975 = vmatpush1.bf16.xpose.msra.mxu0 0
        %976 = vmatprep.subr.bf16.mxu0 0
        %977 = vmatpush1.bf16.xpose.msra.mxu0 0
        %978 = vmatprep.subr.bf16.mxu0 0
        %979 = vmatpush1.bf16.xpose.msra.mxu0 0
        %980 = vmatprep.subr.bf16.mxu0 0
        %981 = vmatpush1.bf16.xpose.msra.mxu0 0
        %982 = vmatprep.subr.bf16.mxu0 0
        %983 = vmatpush1.bf16.xpose.msra.mxu0 0
        %984 = vmatprep.subr.bf16.mxu0 0
        %985 = vmatpush1.bf16.xpose.msra.mxu0 0
        %986 = vmatprep.subr.bf16.mxu0 0
        %987 = vmatpush1.bf16.xpose.msra.mxu0 0
        %988 = vmatprep.subr.bf16.mxu0 0
        %989 = vmatpush1.bf16.xpose.msra.mxu0 0
        %990 = vmatprep.subr.bf16.mxu0 0
        %991 = vmatpush1.bf16.xpose.msra.mxu0 0
        %992 = vmatprep.mubr.bf16.mxu0 0
        %993 = vmatmul.mubr.bf16.gmra.mrb[0].mxu0 %v956
        %v994 = vpop.f32.mrb[0].mxu0
        %v995 = vadd.f32 0.0, %v994
        %v996 = vpop.f32.mrb[0].mxu0
        %v997 = vpop.f32.mrb[0].mxu0
        %v998 = vpop.f32.mrb[0].mxu0
        %999 = vdwg.mxu0
        %v1000 = vsel %vm824, %v995, -inf
        %1001 = vmax.xlane.f32.xlu0 %v1000
        %v1002 = vpop.xlane.xlu0 %1001
        %v1003 = vsub.f32 %v995, %v1002
        %v1004 = vmul.f32 %v1003, 1.442695
        %v1005 = vpow.pop %v1004
        %v1006 = vsel %vm824, %v1005, 0.0
        %1007 = vadd.xlane.f32.xlu0 %v1006
        %v1008 = vpop.xlane.xlu0 %1007
        %v1009 = vrcp.pop %v1008
        %v1010 = vmul.f32 %v1005, %v1009
        %v1011 = vpack.c.bf16 %v1010, %v1010
        %s1012 = scalar_lea.vmem %s599, 4 [#allocation17]
        %1013 = vst.msk [vmem:[%s1012] sm:$0xf] %vm893, %v1011
        %1014 = vrot.lane.b32.xlu0 %v830, 120
        %v1015 = vpop.permute.xlu0 %1014
        %v1017 = vsel %vm824, %v1011, 0
        %v1020 = vsel %vm898, %v1015, 0
        %1022 = vmatprep.subr.bf16.mxu0 0
        %1023 = vmatpush1.bf16.msra.mxu0 %v1020
        %1024 = vmatprep.subr.bf16.mxu0 0
        %1025 = vmatpush1.bf16.msra.mxu0 0
        %1026 = vmatprep.subr.bf16.mxu0 0
        %1027 = vmatpush1.bf16.msra.mxu0 0
        %1028 = vmatprep.subr.bf16.mxu0 0
        %1029 = vmatpush1.bf16.msra.mxu0 0
        %1030 = vmatprep.subr.bf16.mxu0 0
        %1031 = vmatpush1.bf16.msra.mxu0 0
        %1032 = vmatprep.subr.bf16.mxu0 0
        %1033 = vmatpush1.bf16.msra.mxu0 0
        %1034 = vmatprep.subr.bf16.mxu0 0
        %1035 = vmatpush1.bf16.msra.mxu0 0
        %1036 = vmatprep.subr.bf16.mxu0 0
        %1037 = vmatpush1.bf16.msra.mxu0 0
        %1038 = vmatprep.subr.bf16.mxu0 0
        %1039 = vmatpush1.bf16.msra.mxu0 0
        %1040 = vmatprep.subr.bf16.mxu0 0
        %1041 = vmatpush1.bf16.msra.mxu0 0
        %1042 = vmatprep.subr.bf16.mxu0 0
        %1043 = vmatpush1.bf16.msra.mxu0 0
        %1044 = vmatprep.subr.bf16.mxu0 0
        %1045 = vmatpush1.bf16.msra.mxu0 0
        %1046 = vmatprep.subr.bf16.mxu0 0
        %1047 = vmatpush1.bf16.msra.mxu0 0
        %1048 = vmatprep.subr.bf16.mxu0 0
        %1049 = vmatpush1.bf16.msra.mxu0 0
        %1050 = vmatprep.subr.bf16.mxu0 0
        %1051 = vmatpush1.bf16.msra.mxu0 0
        %1052 = vmatprep.subr.bf16.mxu0 0
        %1053 = vmatpush1.bf16.msra.mxu0 0
        %1054 = vmatprep.mubr.bf16.mxu0 0
        %1055 = vmatmul.mubr.bf16.gmra.mrb[0].mxu0 %v1017
        %v1056 = vpop.f32.mrb[0].mxu0
        %v1057 = vadd.f32 0.0, %v1056
        %v1058 = vpop.f32.mrb[0].mxu0
        %v1059 = vpop.f32.mrb[0].mxu0
        %v1060 = vpop.f32.mrb[0].mxu0
        %1061 = vdwg.mxu0
        %v1062 = vpack.c.bf16 %v1057, %v1057
        %1063 = vrot.lane.b32.xlu0 %v813, 112
        %v1064 = vpop.permute.xlu0 %1063
        %1065 = vrot.lane.b32.xlu0 %v820, 120
        %v1066 = vpop.permute.xlu0 %1065
        %v1069 = vsel %vm824, %v1064, %v1066
        %1070 = vrot.lane.b32.xlu0 %v951, 112
        %v1071 = vpop.permute.xlu0 %1070
        %v1073 = vsel %vm824, %v1071, %v1015
        %v1074 = vsel %vm836, %v1069, 0
        %v1076 = vsel %vm836, %v1073, 0
        %1078 = vmatprep.subr.bf16.mxu0 0
        %1079 = vmatpush1.bf16.xpose.msra.mxu0 %v1076
        %1080 = vmatprep.subr.bf16.mxu0 0
        %1081 = vmatpush1.bf16.xpose.msra.mxu0 0
        %1082 = vmatprep.subr.bf16.mxu0 0
        %1083 = vmatpush1.bf16.xpose.msra.mxu0 0
        %1084 = vmatprep.subr.bf16.mxu0 0
        %1085 = vmatpush1.bf16.xpose.msra.mxu0 0
        %1086 = vmatprep.subr.bf16.mxu0 0
        %1087 = vmatpush1.bf16.xpose.msra.mxu0 0
        %1088 = vmatprep.subr.bf16.mxu0 0
        %1089 = vmatpush1.bf16.xpose.msra.mxu0 0
        %1090 = vmatprep.subr.bf16.mxu0 0
        %1091 = vmatpush1.bf16.xpose.msra.mxu0 0
        %1092 = vmatprep.subr.bf16.mxu0 0
        %1093 = vmatpush1.bf16.xpose.msra.mxu0 0
        %1094 = vmatprep.subr.bf16.mxu0 0
        %1095 = vmatpush1.bf16.xpose.msra.mxu0 0
        %1096 = vmatprep.subr.bf16.mxu0 0
        %1097 = vmatpush1.bf16.xpose.msra.mxu0 0
        %1098 = vmatprep.subr.bf16.mxu0 0
        %1099 = vmatpush1.bf16.xpose.msra.mxu0 0
        %1100 = vmatprep.subr.bf16.mxu0 0
        %1101 = vmatpush1.bf16.xpose.msra.mxu0 0
        %1102 = vmatprep.subr.bf16.mxu0 0
        %1103 = vmatpush1.bf16.xpose.msra.mxu0 0
        %1104 = vmatprep.subr.bf16.mxu0 0
        %1105 = vmatpush1.bf16.xpose.msra.mxu0 0
        %1106 = vmatprep.subr.bf16.mxu0 0
        %1107 = vmatpush1.bf16.xpose.msra.mxu0 0
        %1108 = vmatprep.subr.bf16.mxu0 0
        %1109 = vmatpush1.bf16.xpose.msra.mxu0 0
        %1110 = vmatprep.mubr.bf16.mxu0 0
        %1111 = vmatmul.mubr.bf16.gmra.mrb[0].mxu0 %v1074
        %v1112 = vpop.f32.mrb[0].mxu0
        %v1113 = vadd.f32 0.0, %v1112
        %v1114 = vpop.f32.mrb[0].mxu0
        %v1115 = vpop.f32.mrb[0].mxu0
        %v1116 = vpop.f32.mrb[0].mxu0
        %1117 = vdwg.mxu0
        %v1118 = vsel %vm824, %v1113, -inf
        %1119 = vmax.xlane.f32.xlu0 %v1118
        %v1120 = vpop.xlane.xlu0 %1119
        %v1121 = vsub.f32 %v1113, %v1120
        %v1122 = vmul.f32 %v1121, 1.442695
        %v1123 = vpow.pop %v1122
        %v1124 = vsel %vm824, %v1123, 0.0
        %1125 = vadd.xlane.f32.xlu0 %v1124
        %v1126 = vpop.xlane.xlu0 %1125
        %v1127 = vrcp.pop %v1126
        %v1128 = vmul.f32 %v1123, %v1127
        %v1129 = vpack.c.bf16 %v1128, %v1128
        %s1130 = scalar_lea.vmem %s599, 8 [#allocation17]
        %1131 = vst.msk [vmem:[%s1130] sm:$0xf] %vm893, %v1129
        %1132 = vrot.lane.b32.xlu0 %v830, 112
        %v1133 = vpop.permute.xlu0 %1132
        %v1135 = vsel %vm824, %v1129, 0
        %v1138 = vsel %vm898, %v1133, 0
        %1140 = vmatprep.subr.bf16.mxu0 0
        %1141 = vmatpush1.bf16.msra.mxu0 %v1138
        %1142 = vmatprep.subr.bf16.mxu0 0
        %1143 = vmatpush1.bf16.msra.mxu0 0
        %1144 = vmatprep.subr.bf16.mxu0 0
        %1145 = vmatpush1.bf16.msra.mxu0 0
        %1146 = vmatprep.subr.bf16.mxu0 0
        %1147 = vmatpush1.bf16.msra.mxu0 0
        %1148 = vmatprep.subr.bf16.mxu0 0
        %1149 = vmatpush1.bf16.msra.mxu0 0
        %1150 = vmatprep.subr.bf16.mxu0 0
        %1151 = vmatpush1.bf16.msra.mxu0 0
        %1152 = vmatprep.subr.bf16.mxu0 0
        %1153 = vmatpush1.bf16.msra.mxu0 0
        %1154 = vmatprep.subr.bf16.mxu0 0
        %1155 = vmatpush1.bf16.msra.mxu0 0
        %1156 = vmatprep.subr.bf16.mxu0 0
        %1157 = vmatpush1.bf16.msra.mxu0 0
        %1158 = vmatprep.subr.bf16.mxu0 0
        %1159 = vmatpush1.bf16.msra.mxu0 0
        %1160 = vmatprep.subr.bf16.mxu0 0
        %1161 = vmatpush1.bf16.msra.mxu0 0
        %1162 = vmatprep.subr.bf16.mxu0 0
        %1163 = vmatpush1.bf16.msra.mxu0 0
        %1164 = vmatprep.subr.bf16.mxu0 0
        %1165 = vmatpush1.bf16.msra.mxu0 0
        %1166 = vmatprep.subr.bf16.mxu0 0
        %1167 = vmatpush1.bf16.msra.mxu0 0
        %1168 = vmatprep.subr.bf16.mxu0 0
        %1169 = vmatpush1.bf16.msra.mxu0 0
        %1170 = vmatprep.subr.bf16.mxu0 0
        %1171 = vmatpush1.bf16.msra.mxu0 0
        %1172 = vmatprep.mubr.bf16.mxu0 0
        %1173 = vmatmul.mubr.bf16.gmra.mrb[0].mxu0 %v1135
        %v1174 = vpop.f32.mrb[0].mxu0
        %v1175 = vadd.f32 0.0, %v1174
        %v1176 = vpop.f32.mrb[0].mxu0
        %v1177 = vpop.f32.mrb[0].mxu0
        %v1178 = vpop.f32.mrb[0].mxu0
        %1179 = vdwg.mxu0
        %v1180 = vpack.c.bf16 %v1175, %v1175
        %1181 = vrot.lane.b32.xlu0 %v813, 104
        %v1182 = vpop.permute.xlu0 %1181
        %1183 = vrot.lane.b32.xlu0 %v820, 112
        %v1184 = vpop.permute.xlu0 %1183
        %v1187 = vsel %vm824, %v1182, %v1184
        %1188 = vrot.lane.b32.xlu0 %v951, 104
        %v1189 = vpop.permute.xlu0 %1188
        %v1191 = vsel %vm824, %v1189, %v1133
        %v1192 = vsel %vm836, %v1187, 0
        %v1194 = vsel %vm836, %v1191, 0
        %1196 = vmatprep.subr.bf16.mxu0 0
        %1197 = vmatpush1.bf16.xpose.msra.mxu0 %v1194
        %1198 = vmatprep.subr.bf16.mxu0 0
        %1199 = vmatpush1.bf16.xpose.msra.mxu0 0
        %1200 = vmatprep.subr.bf16.mxu0 0
        %1201 = vmatpush1.bf16.xpose.msra.mxu0 0
        %1202 = vmatprep.subr.bf16.mxu0 0
        %1203 = vmatpush1.bf16.xpose.msra.mxu0 0
        %1204 = vmatprep.subr.bf16.mxu0 0
        %1205 = vmatpush1.bf16.xpose.msra.mxu0 0
        %1206 = vmatprep.subr.bf16.mxu0 0
        %1207 = vmatpush1.bf16.xpose.msra.mxu0 0
        %1208 = vmatprep.subr.bf16.mxu0 0
        %1209 = vmatpush1.bf16.xpose.msra.mxu0 0
        %1210 = vmatprep.subr.bf16.mxu0 0
        %1211 = vmatpush1.bf16.xpose.msra.mxu0 0
        %1212 = vmatprep.subr.bf16.mxu0 0
        %1213 = vmatpush1.bf16.xpose.msra.mxu0 0
        %1214 = vmatprep.subr.bf16.mxu0 0
        %1215 = vmatpush1.bf16.xpose.msra.mxu0 0
        %1216 = vmatprep.subr.bf16.mxu0 0
        %1217 = vmatpush1.bf16.xpose.msra.mxu0 0
        %1218 = vmatprep.subr.bf16.mxu0 0
        %1219 = vmatpush1.bf16.xpose.msra.mxu0 0
        %1220 = vmatprep.subr.bf16.mxu0 0
        %1221 = vmatpush1.bf16.xpose.msra.mxu0 0
        %1222 = vmatprep.subr.bf16.mxu0 0
        %1223 = vmatpush1.bf16.xpose.msra.mxu0 0
        %1224 = vmatprep.subr.bf16.mxu0 0
        %1225 = vmatpush1.bf16.xpose.msra.mxu0 0
        %1226 = vmatprep.subr.bf16.mxu0 0
        %1227 = vmatpush1.bf16.xpose.msra.mxu0 0
        %1228 = vmatprep.mubr.bf16.mxu0 0
        %1229 = vmatmul.mubr.bf16.gmra.mrb[0].mxu0 %v1192
        %v1230 = vpop.f32.mrb[0].mxu0
        %v1231 = vadd.f32 0.0, %v1230
        %v1232 = vpop.f32.mrb[0].mxu0
        %v1233 = vpop.f32.mrb[0].mxu0
        %v1234 = vpop.f32.mrb[0].mxu0
        %1235 = vdwg.mxu0
        %v1236 = vsel %vm824, %v1231, -inf
        %1237 = vmax.xlane.f32.xlu0 %v1236
        %v1238 = vpop.xlane.xlu0 %1237
        %v1239 = vsub.f32 %v1231, %v1238
        %v1240 = vmul.f32 %v1239, 1.442695
        %v1241 = vpow.pop %v1240
        %v1242 = vsel %vm824, %v1241, 0.0
        %1243 = vadd.xlane.f32.xlu0 %v1242
        %v1244 = vpop.xlane.xlu0 %1243
        %v1245 = vrcp.pop %v1244
        %v1246 = vmul.f32 %v1241, %v1245
        %v1247 = vpack.c.bf16 %v1246, %v1246
        %s1248 = scalar_lea.vmem %s599, 12 [#allocation17]
        %1249 = vst.msk [vmem:[%s1248] sm:$0xf] %vm893, %v1247
        %1250 = vrot.lane.b32.xlu0 %v830, 104
        %v1251 = vpop.permute.xlu0 %1250
        %v1253 = vsel %vm824, %v1247, 0
        %v1256 = vsel %vm898, %v1251, 0
        %1258 = vmatprep.subr.bf16.mxu0 0
        %1259 = vmatpush1.bf16.msra.mxu0 %v1256
        %1260 = vmatprep.subr.bf16.mxu0 0
        %1261 = vmatpush1.bf16.msra.mxu0 0
        %1262 = vmatprep.subr.bf16.mxu0 0
        %1263 = vmatpush1.bf16.msra.mxu0 0
        %1264 = vmatprep.subr.bf16.mxu0 0
        %1265 = vmatpush1.bf16.msra.mxu0 0
        %1266 = vmatprep.subr.bf16.mxu0 0
        %1267 = vmatpush1.bf16.msra.mxu0 0
        %1268 = vmatprep.subr.bf16.mxu0 0
        %1269 = vmatpush1.bf16.msra.mxu0 0
        %1270 = vmatprep.subr.bf16.mxu0 0
        %1271 = vmatpush1.bf16.msra.mxu0 0
        %1272 = vmatprep.subr.bf16.mxu0 0
        %1273 = vmatpush1.bf16.msra.mxu0 0
        %1274 = vmatprep.subr.bf16.mxu0 0
        %1275 = vmatpush1.bf16.msra.mxu0 0
        %1276 = vmatprep.subr.bf16.mxu0 0
        %1277 = vmatpush1.bf16.msra.mxu0 0
        %1278 = vmatprep.subr.bf16.mxu0 0
        %1279 = vmatpush1.bf16.msra.mxu0 0
        %1280 = vmatprep.subr.bf16.mxu0 0
        %1281 = vmatpush1.bf16.msra.mxu0 0
        %1282 = vmatprep.subr.bf16.mxu0 0
        %1283 = vmatpush1.bf16.msra.mxu0 0
        %1284 = vmatprep.subr.bf16.mxu0 0
        %1285 = vmatpush1.bf16.msra.mxu0 0
        %1286 = vmatprep.subr.bf16.mxu0 0
        %1287 = vmatpush1.bf16.msra.mxu0 0
        %1288 = vmatprep.subr.bf16.mxu0 0
        %1289 = vmatpush1.bf16.msra.mxu0 0
        %1290 = vmatprep.mubr.bf16.mxu0 0
        %1291 = vmatmul.mubr.bf16.gmra.mrb[0].mxu0 %v1253
        %v1292 = vpop.f32.mrb[0].mxu0
        %v1293 = vadd.f32 0.0, %v1292
        %v1294 = vpop.f32.mrb[0].mxu0
        %v1295 = vpop.f32.mrb[0].mxu0
        %v1296 = vpop.f32.mrb[0].mxu0
        %1297 = vdwg.mxu0
        %v1298 = vpack.c.bf16 %v1293, %v1293
        %1300 = vrot.lane.b32.xlu0 %v1062, 8
        %v1301 = vpop.permute.xlu0 %1300
        %1303 = vrot.lane.b32.xlu0 %v1180, 16
        %v1304 = vpop.permute.xlu0 %1303
        %1306 = vrot.lane.b32.xlu0 %v1298, 24
        %v1307 = vpop.permute.xlu0 %1306
        %v1310 = vsel %vm824, %v942, %v1301
        %v1312 = vsel %vm836, %v1310, %v1304
        %vm1313 = vcmask 195584
        %v1315 = vsel %vm1313, %v1312, %v1307
        %v1316 = vld [vmem:[%s10] sm:$0xf]
        %v1317 = vld [vmem:[%s10 + $0x4] sm:$0xf]
        %v1318 = vld [vmem:[%s10 + $0x8] sm:$0xf]
        %v1319 = vld [vmem:[%s10 + $0xc] sm:$0xf]
        %v1320 = vld [vmem:[%s11] sm:$0x1]
        %v1322 = vlaneseq
        %v1323 = vshrl.u32 %v1322, 7
        %v1324 = vsub.s32 0, %v1323
        %v1325 = vrot.slane %v1320, %v1324
        %v1331 = vunpack.c.l.b16 %v1316
        %v1332 = vunpack.c.l.b16 %v1317
        %v1333 = vunpack.c.l.b16 %v1318
        %v1334 = vunpack.c.l.b16 %v1319
        %v1335 = vpack.c.b16 %v1332, %v1331
        %v1336 = vpack.c.b16 %v1334, %v1333
        %v1339 = vsel %vm769, %v1315, 0
        %1341 = vmatprep.subr.bf16.mxu0 0
        %1342 = vmatpush1.bf16.msra.mxu0 %v1335
        %1343 = vmatprep.subr.bf16.mxu0 0
        %1344 = vmatpush1.bf16.msra.mxu0 %v1336
        %1345 = vmatprep.subr.bf16.mxu0 0
        %1346 = vmatpush1.bf16.msra.mxu0 0
        %1347 = vmatprep.subr.bf16.mxu0 0
        %1348 = vmatpush1.bf16.msra.mxu0 0
        %1349 = vmatprep.subr.bf16.mxu0 0
        %1350 = vmatpush1.bf16.msra.mxu0 0
        %1351 = vmatprep.subr.bf16.mxu0 0
        %1352 = vmatpush1.bf16.msra.mxu0 0
        %1353 = vmatprep.subr.bf16.mxu0 0
        %1354 = vmatpush1.bf16.msra.mxu0 0
        %1355 = vmatprep.subr.bf16.mxu0 0
        %1356 = vmatpush1.bf16.msra.mxu0 0
        %1357 = vmatprep.subr.bf16.mxu0 0
        %1358 = vmatpush1.bf16.msra.mxu0 0
        %1359 = vmatprep.subr.bf16.mxu0 0
        %1360 = vmatpush1.bf16.msra.mxu0 0
        %1361 = vmatprep.subr.bf16.mxu0 0
        %1362 = vmatpush1.bf16.msra.mxu0 0
        %1363 = vmatprep.subr.bf16.mxu0 0
        %1364 = vmatpush1.bf16.msra.mxu0 0
        %1365 = vmatprep.subr.bf16.mxu0 0
        %1366 = vmatpush1.bf16.msra.mxu0 0
        %1367 = vmatprep.subr.bf16.mxu0 0
        %1368 = vmatpush1.bf16.msra.mxu0 0
        %1369 = vmatprep.subr.bf16.mxu0 0
        %1370 = vmatpush1.bf16.msra.mxu0 0
        %1371 = vmatprep.subr.bf16.mxu0 0
        %1372 = vmatpush1.bf16.msra.mxu0 0
        %1373 = vmatprep.mubr.bf16.mxu0 0
        %1374 = vmatmul.mubr.bf16.gmra.mrb[0].mxu0 %v1339
        %v1375 = vpop.f32.mrb[0].mxu0
        %v1376 = vadd.f32 %v1325, %v1375
        %v1377 = vpop.f32.mrb[0].mxu0
        %v1378 = vpop.f32.mrb[0].mxu0
        %v1379 = vpop.f32.mrb[0].mxu0
        %1380 = vdwg.mxu0
        %1381 = vst.msk [vmem:[%s592] sm:$0xff] %vm769, %v1376
        %s1382 = sand.u32 %s331, 1
        %s1383 = scalar_lea.sflag [#allocation7], %s1382
        %s1384 = sand.u32 %s331, 1
        %s1385 = smul.addr %s1384, 8
        %s1386 = scalar_lea.vmem [#allocation16], %s1385
        %s1387 = sand.u32 %s359, 1
        %s1388 = scalar_lea.sflag [#allocation18], %s1387
        %s1389 = sand.u32 %s359, 1
        %s1390 = smul.addr %s1389, 16
        %s1391 = scalar_lea.vmem [#allocation17], %s1390
        // Predicated region
        $region97: #{tpu_custom_call.1} parent=67 // pred_check
          %p1392 = pneg %p341
        $region98: #{tpu_custom_call.1} parent=67 // pred_check_branch
          %1394 = sbr.rel (%p1392) target = $region100
        $region99: #{tpu_custom_call.1} parent=67 // pred_region
          %s1396 = ssub.s32 128, 128
          %1397 = vsyncadd %s1383, %s1396
          %s1398 = sadd.s32 %s45, %s44
          %s1399 = smul.addr %s1398, 128
          %s1400 = scalar_lea.hbm %s12, %s1399
          %s1402 = sshll.u32 %s1386, 4
          %s1403 = int_to_ptr.vmem [resolvable:$true] %s1402
          %1405 = dma.vmem_to_hbm [thread:$0]  %s1403, 128, %s1400, %s1383
        $region100: #{tpu_custom_call.1} parent=67 // pred_fallthru
          _
        // Predicated region
        $region101: #{tpu_custom_call.1} parent=67 // pred_check
          %p1406 = pneg %p369
        $region102: #{tpu_custom_call.1} parent=67 // pred_check_branch
          %1408 = sbr.rel (%p1406) target = $region104
        $region103: #{tpu_custom_call.1} parent=67 // pred_region
          %s1410 = ssub.s32 256, 256
          %1411 = vsyncadd %s1388, %s1410
          %s1412 = smul.addr %s44, 4
          %s1413 = sadd.s32 %s45, %s1412
          %s1414 = smul.addr %s1413, 64
          %s1415 = scalar_lea.hbm %s13, %s1414
          %s1416 = sshll.u32 %s1391, 4
          %s1417 = int_to_ptr.vmem [resolvable:$true] %s1416
          %1422 = dma.vmem_to_hbm [thread:$0]  %s1417, 256, %s1415, %s1388, 64, 64, 4
        $region104: #{tpu_custom_call.1} parent=67 // pred_fallthru
          _
      $region68: #{tpu_custom_call.1} parent=5 // pred_fallthru
        _
      %p1423 = scmp.le.s32.totalorder 2, %s35
      // Predicated region
      $region105: #{tpu_custom_call.1} parent=5 // pred_check
        %p1424 = pneg %p1423
      $region106: #{tpu_custom_call.1} parent=5 // pred_check_branch
        %1426 = sbr.rel (%p1424) target = $region108
      $region107: #{tpu_custom_call.1} parent=5 // pred_region
        %s1427 = ssub.s32 %s35, 2
        // Predicated region
        $region109: #{tpu_custom_call.1} parent=107 // pred_check
          %p1428 = pneg %p347
        $region110: #{tpu_custom_call.1} parent=107 // pred_check_branch
          %1430 = sbr.rel (%p1428) target = $region112
        $region111: #{tpu_custom_call.1} parent=107 // pred_region
          %s1431 = sand.u32 %s332, 1
          %s1432 = scalar_lea.sflag [#allocation7], %s1431
          %s1433 = sand.u32 %s332, 1
          %s1434 = smul.addr %s1433, 8
          %s1435 = scalar_lea.vmem [#allocation16], %s1434
          %1436 = dma.done %s1432, 128
        $region112: #{tpu_custom_call.1} parent=107 // pred_fallthru
          _
        // Predicated region
        $region113: #{tpu_custom_call.1} parent=107 // pred_check
          %p1437 = pneg %p375
        $region114: #{tpu_custom_call.1} parent=107 // pred_check_branch
          %1439 = sbr.rel (%p1437) target = $region116
        $region115: #{tpu_custom_call.1} parent=107 // pred_region
          %s1440 = sand.u32 %s360, 1
          %s1441 = scalar_lea.sflag [#allocation18], %s1440
          %s1442 = sand.u32 %s360, 1
          %s1443 = smul.addr %s1442, 16
          %s1444 = scalar_lea.vmem [#allocation17], %s1443
          %1445 = dma.done %s1441, 256
        $region116: #{tpu_custom_call.1} parent=107 // pred_fallthru
          _
      $region108: #{tpu_custom_call.1} parent=5 // pred_fallthru
        _
    $region6: #{tpu_custom_call.1} parent=1 // loop_footer
      %s39 = sadd.s32 1, %s35
    $region7: #{tpu_custom_call.1} parent=1 // loop_footer_branch
      %34 = sbr.rel target = $region3
    $region8: #{tpu_custom_call.1} parent=1 // loop_exit
      _
    %1446 = vsyncpa [#allocation6], 1
    %s1447 = scalar_lea.sflag [#allocation6], 1
    %1448 = vsyncpa %s1447, 1
    %1449 = vsyncpa [#allocation9], 1
    %s1450 = scalar_lea.sflag [#allocation9], 1
    %1451 = vsyncpa %s1450, 1
    %1452 = vsyncpa [#allocation12], 1
    %1453 = vsyncpa [#allocation15], 1
    %1454 = vsyncpa [#allocation7], 1
    %s1455 = scalar_lea.sflag [#allocation7], 1
    %1456 = vsyncpa %s1455, 1
    %1457 = vsyncpa [#allocation18], 1
    %s1458 = scalar_lea.sflag [#allocation18], 1
    %1459 = vsyncpa %s1458, 1

</llo_original>
